<compile_context>
chip_gen: v7x
topology: tpu7x:2x2x1
jax: 0.10.0
libtpu: 0.0.40
codegen_flags: <defaults>
</compile_context>

<pallas_src>
import jax
import jax.numpy as jnp
from jax.experimental import pallas as pl
from jax.experimental.pallas import tpu as pltpu

EPS = 1e-5


# ---------------------------------------------------------------------------
# kernels
# ---------------------------------------------------------------------------
def conv1_kernel(xpad_ref, t_ref, h1pad_ref, stats_ref):
    """3x3 conv (no bias) on the row-padded input; writes row-padded raw output
    plus per-sample (sum, sum_sq) rows for the global BN1 statistics."""
    Hp, _ = xpad_ref.shape
    H = Hp - 2
    WCout = h1pad_ref.shape[-1]

    x = xpad_ref[...].astype(jnp.bfloat16)            # bf16 into the MXU
    acc = jnp.zeros((H, WCout), jnp.float32)
    for dy in range(3):                               # 3 wide-K matmuls
        acc += jnp.dot(x[dy:dy + H, :], t_ref[dy],
                       preferred_element_type=jnp.float32)

    zrow = jnp.zeros((1, WCout), jnp.float32)
    h1pad_ref[0:1, :] = zrow                          # halo rows for conv2
    h1pad_ref[H + 1:H + 2, :] = zrow
    h1pad_ref[1:H + 1, :] = acc

    stats_ref[0:1, :] = jnp.sum(acc, axis=0, keepdims=True)
    stats_ref[1:2, :] = jnp.sum(acc * acc, axis=0, keepdims=True)


def conv2_kernel(h1pad_ref, t_ref, scale_ref, shift_ref, h2_ref, stats_ref):
    """BN1 affine + ReLU on the raw conv1 output, then the second 3x3 conv
    (no bias); emits raw conv2 output + per-sample BN2 partial sums."""
    Hp, WCout = h1pad_ref.shape
    H = Hp - 2

    a = jnp.maximum(h1pad_ref[...] * scale_ref[...] + shift_ref[...], 0.0)
    # re-zero the two halo rows: padding must be zero *after* BN + ReLU
    row = jax.lax.broadcasted_iota(jnp.int32, (Hp, 1), 0)
    a = jnp.where(jnp.logical_and(row >= 1, row <= H), a, 0.0)
    a = a.astype(jnp.bfloat16)

    acc = jnp.zeros((H, WCout), jnp.float32)
    for dy in range(3):
        acc += jnp.dot(a[dy:dy + H, :], t_ref[dy],
                       preferred_element_type=jnp.float32)

    h2_ref[...] = acc
    stats_ref[0:1, :] = jnp.sum(acc, axis=0, keepdims=True)
    stats_ref[1:2, :] = jnp.sum(acc * acc, axis=0, keepdims=True)


def out_proj_kernel(h2_ref, x_ref, s_ref, bs_ref, scale_ref, shift_ref, out_ref):
    """BN2 affine + 1x1-conv shortcut (block-diagonal matmul) + residual add."""
    y = h2_ref[...] * scale_ref[...] + shift_ref[...]
    sc = jnp.dot(x_ref[...].astype(jnp.bfloat16), s_ref[...],
                 preferred_element_type=jnp.float32) + bs_ref[...]
    out_ref[...] = y + sc


def out_identity_kernel(h2_ref, x_ref, scale_ref, shift_ref, out_ref):
    """BN2 affine + identity shortcut (Cin == Cout): the 1x1 matmul is skipped."""
    out_ref[...] = h2_ref[...] * scale_ref[...] + shift_ref[...] + x_ref[...]


# ---------------------------------------------------------------------------
# wrapper-side helpers (tiny XLA ops, run once per call)
# ---------------------------------------------------------------------------
def _toeplitz_conv_weights(w, W):
    """(3, 3, Cin, Cout) HWIO -> (3, W*Cin, W*Cout): folds the width axis and its
    zero padding into the contraction so each 3x3 conv is 3 MXU matmuls."""
    kh, kw, cin, cout = w.shape
    mats = []
    for dy in range(kh):
        t = jnp.zeros((W * cin, W * cout), w.dtype)
        for dx in range(kw):
            band = jnp.eye(W, k=1 - dx, dtype=w.dtype)  # in_col == out_col + dx - 1
            t = t + jnp.kron(band, w[dy, dx])
        mats.append(t)
    return jnp.stack(mats, axis=0)


def _bn_affine(stats, gamma, beta, count, W, cout):
    """Finalize global BN statistics from per-sample (sum, sum_sq) rows and
    return lane-tiled (1, W*cout) scale / shift rows."""
    s = stats[:, 0, :].reshape(-1, W, cout).sum(axis=(0, 1))
    ss = stats[:, 1, :].reshape(-1, W, cout).sum(axis=(0, 1))
    mean = s / count
    var = ss / count - mean * mean                      # biased var (training BN)
    scale = gamma.reshape(-1) * jax.lax.rsqrt(var + EPS)
    shift = beta.reshape(-1) - mean * scale
    return (jnp.tile(scale.reshape(1, cout), (1, W)),
            jnp.tile(shift.reshape(1, cout), (1, W)))


# ---------------------------------------------------------------------------
# forward pass
# ---------------------------------------------------------------------------
def residual_block(x_nchw, p):
    """x_nchw: (N, Cin, H, W) float32 -> (N, Cout, H, W) float32."""
    N, Cin, H, W = x_nchw.shape
    Cout = p["w1"].shape[-1]
    WCin, WCout = W * Cin, W * Cout
    count = N * H * W

    # TODO(synk): keep the surrounding model NHWC end-to-end so these two
    # transposes do not round-trip HBM outside the kernels.
    x_flat = jnp.transpose(x_nchw, (0, 2, 3, 1)).reshape(N, H, WCin)
    x_pad = jnp.pad(x_flat, ((0, 0), (1, 1), (0, 0)))   # row halo only (2 rows)

    t1 = _toeplitz_conv_weights(p["w1"], W).astype(jnp.bfloat16)
    t2 = _toeplitz_conv_weights(p["w2"], W).astype(jnp.bfloat16)

    cparams = pltpu.CompilerParams(dimension_semantics=("parallel",),
                                   vmem_limit_bytes=32 * 1024 * 1024)

    def row_spec(c):
        return pl.BlockSpec((1, c), lambda n: (0, 0))

    # ---- pass 1: conv1 + BN1 partial sums ---------------------------------
    h1_pad, st1 = pl.pallas_call(
        conv1_kernel,
        grid=(N,),
        in_specs=[pl.BlockSpec((None, H + 2, WCin), lambda n: (n, 0, 0)),
                  pl.BlockSpec((3, WCin, WCout), lambda n: (0, 0, 0))],
        out_specs=(pl.BlockSpec((None, H + 2, WCout), lambda n: (n, 0, 0)),
                   pl.BlockSpec((None, 2, WCout), lambda n: (n, 0, 0))),
        out_shape=(jax.ShapeDtypeStruct((N, H + 2, WCout), jnp.float32),
                   jax.ShapeDtypeStruct((N, 2, WCout), jnp.float32)),
        compiler_params=cparams,
    )(x_pad, t1)
    scale1, shift1 = _bn_affine(st1, p["g1"], p["be1"], count, W, Cout)

    # ---- pass 2: BN1 affine + ReLU + conv2 + BN2 partial sums -------------
    h2, st2 = pl.pallas_call(
        conv2_kernel,
        grid=(N,),
        in_specs=[pl.BlockSpec((None, H + 2, WCout), lambda n: (n, 0, 0)),
                  pl.BlockSpec((3, WCout, WCout), lambda n: (0, 0, 0)),
                  row_spec(WCout), row_spec(WCout)],
        out_specs=(pl.BlockSpec((None, H, WCout), lambda n: (n, 0, 0)),
                   pl.BlockSpec((None, 2, WCout), lambda n: (n, 0, 0))),
        out_shape=(jax.ShapeDtypeStruct((N, H, WCout), jnp.float32),
                   jax.ShapeDtypeStruct((N, 2, WCout), jnp.float32)),
        compiler_params=cparams,
    )(h1_pad, t2, scale1, shift1)
    scale2, shift2 = _bn_affine(st2, p["g2"], p["be2"], count, W, Cout)

    # ---- pass 3: BN2 affine + shortcut + residual add ----------------------
    h2_spec = pl.BlockSpec((None, H, WCout), lambda n: (n, 0, 0))
    x_spec = pl.BlockSpec((None, H, WCin), lambda n: (n, 0, 0))
    out_spec = pl.BlockSpec((None, H, WCout), lambda n: (n, 0, 0))
    out_shape = jax.ShapeDtypeStruct((N, H, WCout), jnp.float32)

    if Cin == Cout:   # nn.Sequential() shortcut -> skip the 1x1 matmul entirely
        out_flat = pl.pallas_call(
            out_identity_kernel,
            grid=(N,),
            in_specs=[h2_spec, x_spec, row_spec(WCout), row_spec(WCout)],
            out_specs=out_spec,
            out_shape=out_shape,
            compiler_params=cparams,
        )(h2, x_flat, scale2, shift2)
    else:
        s_mat = jnp.kron(jnp.eye(W, dtype=jnp.float32),
                         p["ws"]).astype(jnp.bfloat16)       # (W*Cin, W*Cout)
        bs_row = jnp.tile(p["bs"].reshape(1, Cout), (1, W))
        out_flat = pl.pallas_call(
            out_proj_kernel,
            grid=(N,),
            in_specs=[h2_spec, x_spec,
                      pl.BlockSpec((WCin, WCout), lambda n: (0, 0)),
                      row_spec(WCout), row_spec(WCout), row_spec(WCout)],
            out_specs=out_spec,
            out_shape=out_shape,
            compiler_params=cparams,
        )(h2, x_flat, s_mat, bs_row, scale2, shift2)

    return jnp.transpose(out_flat.reshape(N, H, W, Cout), (0, 3, 1, 2))


# ---------------------------------------------------------------------------
# params + pure-JAX reference (PyTorch training-mode BatchNorm semantics)
# ---------------------------------------------------------------------------
def make_params(key, cin, cout):
    ks = jax.random.split(key, 10)
    p = {
        "w1": 0.1 * jax.random.normal(ks[0], (3, 3, cin, cout), jnp.float32),
        "b1": 0.1 * jax.random.normal(ks[1], (1, cout), jnp.float32),
        "g1": 1.0 + 0.1 * jax.random.normal(ks[2], (1, cout), jnp.float32),
        "be1": 0.1 * jax.random.normal(ks[3], (1, cout), jnp.float32),
        "w2": 0.1 * jax.random.normal(ks[4], (3, 3, cout, cout), jnp.float32),
        "b2": 0.1 * jax.random.normal(ks[5], (1, cout), jnp.float32),
        "g2": 1.0 + 0.1 * jax.random.normal(ks[6], (1, cout), jnp.float32),
        "be2": 0.1 * jax.random.normal(ks[7], (1, cout), jnp.float32),
    }
    if cin != cout:
        p["ws"] = 0.1 * jax.random.normal(ks[8], (cin, cout), jnp.float32)
        p["bs"] = 0.1 * jax.random.normal(ks[9], (1, cout), jnp.float32)
    else:  # nn.Sequential() shortcut == identity
        p["ws"] = jnp.eye(cin, dtype=jnp.float32)
        p["bs"] = jnp.zeros((1, cout), jnp.float32)
    return p


def ref_forward(x_nchw, p):
    dn = ("NHWC", "HWIO", "NHWC")
    x = jnp.transpose(x_nchw, (0, 2, 3, 1))

    def bn(h, g, b):
        mean = jnp.mean(h, axis=(0, 1, 2), keepdims=True)
        var = jnp.mean((h - mean) ** 2, axis=(0, 1, 2), keepdims=True)
        return (h - mean) * jax.lax.rsqrt(var + EPS) * g + b

    h = jax.lax.conv_general_dilated(x, p["w1"], (1, 1), "SAME",
                                     dimension_numbers=dn) + p["b1"]
    h = jnp.maximum(bn(h, p["g1"], p["be1"]), 0.0)
    h = jax.lax.conv_general_dilated(h, p["w2"], (1, 1), "SAME",
                                     dimension_numbers=dn) + p["b2"]
    h = bn(h, p["g2"], p["be2"])
    sc = jnp.einsum("nhwc,cd->nhwd", x, p["ws"]) + p["bs"]
    return jnp.transpose(h + sc, (0, 3, 1, 2))


if __name__ == "__main__":
    key = jax.random.PRNGKey(0)
    kx, kp = jax.random.split(key)

    N, Cin, Cout, H, W = 2, 4, 8, 16, 16
    x = jax.random.normal(kx, (N, Cin, H, W), jnp.float32)
    params = make_params(kp, Cin, Cout)

    fwd = jax.jit(residual_block)
    out = jax.block_until_ready(fwd(x, params))
    ref = jax.block_until_ready(ref_forward(x, params))

    assert out.shape == (N, Cout, H, W)
    assert bool(jnp.all(jnp.isfinite(out)))
    err = float(jnp.max(jnp.abs(out - ref)))
    # bf16 MXU inputs with f32 accumulation vs a pure-f32 XLA reference
    assert bool(jnp.allclose(out, ref, atol=5e-2, rtol=5e-2)), f"max abs err {err}"
    print("KERNEL_OK")
</pallas_src>

<mosaic_0001>
module attributes {stable_mosaic.version = 11 : i64} {
  func.func @conv1_kernel(%arg0: i32, %arg1: memref<1x18x64xf32, #tpu.memory_space<vmem>>, %arg2: memref<3x64x128xbf16, #tpu.memory_space<vmem>>, %arg3: memref<1x18x128xf32, #tpu.memory_space<vmem>>, %arg4: memref<1x2x128xf32, #tpu.memory_space<vmem>>) attributes {dimension_semantics = [#tpu.dimension_semantics<parallel>], iteration_bounds = array<i64: 2>, scalar_prefetch = 0 : i64, scratch_operands = 0 : i64, tpu.core_type = #tpu.core_type<tc>, window_params = [{transform_indices = @transform_0, window_bounds = array<i64: 1, 18, 64>}, {pipeline_mode = #tpu.pipeline_mode<synchronous>, transform_indices = @transform_1, window_bounds = array<i64: 3, 64, 128>}, {transform_indices = @transform_2, window_bounds = array<i64: 1, 18, 128>}, {transform_indices = @transform_3, window_bounds = array<i64: 1, 2, 128>}]} {
    %c0 = arith.constant 0 : index
    %c0_0 = arith.constant 0 : index
    %c0_1 = arith.constant 0 : index
    %0 = vector.load %arg1[%c0, %c0_0, %c0_1] : memref<1x18x64xf32, #tpu.memory_space<vmem>>, vector<1x18x64xf32>
    %1 = vector.shape_cast %0 : vector<1x18x64xf32> to vector<18x64xf32>
    %2 = arith.truncf %1 : vector<18x64xf32> to vector<18x64xbf16>
    %cst = arith.constant 0.000000e+00 : f32
    %3 = vector.broadcast %cst : f32 to vector<16x128xf32>
    %4 = vector.extract_strided_slice %2 {offsets = [0, 0], sizes = [16, 64], strides = [1, 1]} : vector<18x64xbf16> to vector<16x64xbf16>
    %c0_2 = arith.constant 0 : index
    %c0_3 = arith.constant 0 : index
    %c0_4 = arith.constant 0 : index
    %5 = vector.load %arg2[%c0_2, %c0_3, %c0_4] : memref<3x64x128xbf16, #tpu.memory_space<vmem>>, vector<1x64x128xbf16>
    %6 = vector.shape_cast %5 : vector<1x64x128xbf16> to vector<64x128xbf16>
    %cst_5 = arith.constant dense<0.000000e+00> : vector<16x128xf32>
    %7 = tpu.matmul %4, %6, %cst_5 {dimension_numbers = #tpu.dot_dimension_numbers<[1], [0], [0], [1], [0, 0, 1, 1], [], []>} : vector<16x64xbf16>, vector<64x128xbf16>, vector<16x128xf32> -> vector<16x128xf32>
    %8 = arith.addf %3, %7 : vector<16x128xf32>
    %9 = vector.extract_strided_slice %2 {offsets = [1, 0], sizes = [16, 64], strides = [1, 1]} : vector<18x64xbf16> to vector<16x64xbf16>
    %c1 = arith.constant 1 : index
    %c0_6 = arith.constant 0 : index
    %c0_7 = arith.constant 0 : index
    %10 = vector.load %arg2[%c1, %c0_6, %c0_7] : memref<3x64x128xbf16, #tpu.memory_space<vmem>>, vector<1x64x128xbf16>
    %11 = vector.shape_cast %10 : vector<1x64x128xbf16> to vector<64x128xbf16>
    %cst_8 = arith.constant dense<0.000000e+00> : vector<16x128xf32>
    %12 = tpu.matmul %9, %11, %cst_8 {dimension_numbers = #tpu.dot_dimension_numbers<[1], [0], [0], [1], [0, 0, 1, 1], [], []>} : vector<16x64xbf16>, vector<64x128xbf16>, vector<16x128xf32> -> vector<16x128xf32>
    %13 = arith.addf %8, %12 : vector<16x128xf32>
    %14 = vector.extract_strided_slice %2 {offsets = [2, 0], sizes = [16, 64], strides = [1, 1]} : vector<18x64xbf16> to vector<16x64xbf16>
    %c2 = arith.constant 2 : index
    %c0_9 = arith.constant 0 : index
    %c0_10 = arith.constant 0 : index
    %15 = vector.load %arg2[%c2, %c0_9, %c0_10] : memref<3x64x128xbf16, #tpu.memory_space<vmem>>, vector<1x64x128xbf16>
    %16 = vector.shape_cast %15 : vector<1x64x128xbf16> to vector<64x128xbf16>
    %cst_11 = arith.constant dense<0.000000e+00> : vector<16x128xf32>
    %17 = tpu.matmul %14, %16, %cst_11 {dimension_numbers = #tpu.dot_dimension_numbers<[1], [0], [0], [1], [0, 0, 1, 1], [], []>} : vector<16x64xbf16>, vector<64x128xbf16>, vector<16x128xf32> -> vector<16x128xf32>
    %18 = arith.addf %13, %17 : vector<16x128xf32>
    %cst_12 = arith.constant 0.000000e+00 : f32
    %19 = vector.broadcast %cst_12 : f32 to vector<1x128xf32>
    %c0_13 = arith.constant 0 : index
    %c0_14 = arith.constant 0 : index
    %c0_15 = arith.constant 0 : index
    %20 = vector.load %arg3[%c0_13, %c0_14, %c0_15] : memref<1x18x128xf32, #tpu.memory_space<vmem>>, vector<1x1x128xf32>
    %21 = vector.shape_cast %20 : vector<1x1x128xf32> to vector<1x128xf32>
    %22 = vector.shape_cast %19 : vector<1x128xf32> to vector<1x1x128xf32>
    tpu.vector_store %arg3[%c0_13, %c0_14, %c0_15], %22 {strides = array<i32>} : memref<1x18x128xf32, #tpu.memory_space<vmem>>, vector<1x1x128xf32>,
    %c0_16 = arith.constant 0 : index
    %c17 = arith.constant 17 : index
    %c0_17 = arith.constant 0 : index
    %23 = vector.load %arg3[%c0_16, %c17, %c0_17] : memref<1x18x128xf32, #tpu.memory_space<vmem>>, vector<1x1x128xf32>
    %24 = vector.shape_cast %23 : vector<1x1x128xf32> to vector<1x128xf32>
    %25 = vector.shape_cast %19 : vector<1x128xf32> to vector<1x1x128xf32>
    tpu.vector_store %arg3[%c0_16, %c17, %c0_17], %25 {strides = array<i32>} : memref<1x18x128xf32, #tpu.memory_space<vmem>>, vector<1x1x128xf32>,
    %c0_18 = arith.constant 0 : index
    %c1_19 = arith.constant 1 : index
    %c0_20 = arith.constant 0 : index
    %26 = vector.load %arg3[%c0_18, %c1_19, %c0_20] : memref<1x18x128xf32, #tpu.memory_space<vmem>>, vector<1x16x128xf32>
    %27 = vector.shape_cast %26 : vector<1x16x128xf32> to vector<16x128xf32>
    %28 = vector.shape_cast %18 : vector<16x128xf32> to vector<1x16x128xf32>
    tpu.vector_store %arg3[%c0_18, %c1_19, %c0_20], %28 {strides = array<i32>} : memref<1x18x128xf32, #tpu.memory_space<vmem>>, vector<1x16x128xf32>,
    %cst_21 = arith.constant dense<0.000000e+00> : vector<128xf32>
    %29 = vector.multi_reduction <add>, %18, %cst_21 [0] : vector<16x128xf32> to vector<128xf32>
    %30 = vector.shape_cast %29 : vector<128xf32> to vector<1x128xf32>
    %c0_22 = arith.constant 0 : index
    %c0_23 = arith.constant 0 : index
    %c0_24 = arith.constant 0 : index
    %31 = vector.load %arg4[%c0_22, %c0_23, %c0_24] : memref<1x2x128xf32, #tpu.memory_space<vmem>>, vector<1x1x128xf32>
    %32 = vector.shape_cast %31 : vector<1x1x128xf32> to vector<1x128xf32>
    %33 = vector.shape_cast %30 : vector<1x128xf32> to vector<1x1x128xf32>
    tpu.vector_store %arg4[%c0_22, %c0_23, %c0_24], %33 {strides = array<i32>} : memref<1x2x128xf32, #tpu.memory_space<vmem>>, vector<1x1x128xf32>,
    %34 = arith.mulf %18, %18 : vector<16x128xf32>
    %cst_25 = arith.constant dense<0.000000e+00> : vector<128xf32>
    %35 = vector.multi_reduction <add>, %34, %cst_25 [0] : vector<16x128xf32> to vector<128xf32>
    %36 = vector.shape_cast %35 : vector<128xf32> to vector<1x128xf32>
    %c0_26 = arith.constant 0 : index
    %c1_27 = arith.constant 1 : index
    %c0_28 = arith.constant 0 : index
    %37 = vector.load %arg4[%c0_26, %c1_27, %c0_28] : memref<1x2x128xf32, #tpu.memory_space<vmem>>, vector<1x1x128xf32>
    %38 = vector.shape_cast %37 : vector<1x1x128xf32> to vector<1x128xf32>
    %39 = vector.shape_cast %36 : vector<1x128xf32> to vector<1x1x128xf32>
    tpu.vector_store %arg4[%c0_26, %c1_27, %c0_28], %39 {strides = array<i32>} : memref<1x2x128xf32, #tpu.memory_space<vmem>>, vector<1x1x128xf32>,
    return
  }
  func.func @transform_0(%arg0: i32) -> (i32, i32, i32) {
    %c0_i32 = arith.constant 0 : i32
    %c0_i32_0 = arith.constant 0 : i32
    %c0_i32_1 = arith.constant 0 : i32
    return %arg0, %c0_i32, %c0_i32_0 : i32, i32, i32
  }
  func.func @transform_1(%arg0: i32) -> (i32, i32, i32) {
    %c0_i32 = arith.constant 0 : i32
    %c0_i32_0 = arith.constant 0 : i32
    %c0_i32_1 = arith.constant 0 : i32
    %c0_i32_2 = arith.constant 0 : i32
    return %c0_i32, %c0_i32_0, %c0_i32_1 : i32, i32, i32
  }
  func.func @transform_2(%arg0: i32) -> (i32, i32, i32) {
    %c0_i32 = arith.constant 0 : i32
    %c0_i32_0 = arith.constant 0 : i32
    %c0_i32_1 = arith.constant 0 : i32
    return %arg0, %c0_i32, %c0_i32_0 : i32, i32, i32
  }
  func.func @transform_3(%arg0: i32) -> (i32, i32, i32) {
    %c0_i32 = arith.constant 0 : i32
    %c0_i32_0 = arith.constant 0 : i32
    %c0_i32_1 = arith.constant 0 : i32
    return %arg0, %c0_i32, %c0_i32_0 : i32, i32, i32
  }
}

module attributes {stable_mosaic.version = 11 : i64} {
  func.func @conv2_kernel(%arg0: i32, %arg1: memref<1x18x128xf32, #tpu.memory_space<vmem>>, %arg2: memref<3x128x128xbf16, #tpu.memory_space<vmem>>, %arg3: memref<1x128xf32, #tpu.memory_space<vmem>>, %arg4: memref<1x128xf32, #tpu.memory_space<vmem>>, %arg5: memref<1x16x128xf32, #tpu.memory_space<vmem>>, %arg6: memref<1x2x128xf32, #tpu.memory_space<vmem>>) attributes {dimension_semantics = [#tpu.dimension_semantics<parallel>], iteration_bounds = array<i64: 2>, scalar_prefetch = 0 : i64, scratch_operands = 0 : i64, tpu.core_type = #tpu.core_type<tc>, window_params = [{transform_indices = @transform_0, window_bounds = array<i64: 1, 18, 128>}, {pipeline_mode = #tpu.pipeline_mode<synchronous>, transform_indices = @transform_1, window_bounds = array<i64: 3, 128, 128>}, {pipeline_mode = #tpu.pipeline_mode<synchronous>, transform_indices = @transform_2, window_bounds = array<i64: 1, 128>}, {pipeline_mode = #tpu.pipeline_mode<synchronous>, transform_indices = @transform_3, window_bounds = array<i64: 1, 128>}, {transform_indices = @transform_4, window_bounds = array<i64: 1, 16, 128>}, {transform_indices = @transform_5, window_bounds = array<i64: 1, 2, 128>}]} {
    %c0 = arith.constant 0 : index
    %c0_0 = arith.constant 0 : index
    %c0_1 = arith.constant 0 : index
    %0 = vector.load %arg1[%c0, %c0_0, %c0_1] : memref<1x18x128xf32, #tpu.memory_space<vmem>>, vector<1x18x128xf32>
    %1 = vector.shape_cast %0 : vector<1x18x128xf32> to vector<18x128xf32>
    %c0_2 = arith.constant 0 : index
    %c0_3 = arith.constant 0 : index
    %2 = vector.load %arg3[%c0_2, %c0_3] : memref<1x128xf32, #tpu.memory_space<vmem>>, vector<1x128xf32>
    %3 = vector.broadcast %2 : vector<1x128xf32> to vector<18x128xf32>
    %4 = arith.mulf %1, %3 : vector<18x128xf32>
    %c0_4 = arith.constant 0 : index
    %c0_5 = arith.constant 0 : index
    %5 = vector.load %arg4[%c0_4, %c0_5] : memref<1x128xf32, #tpu.memory_space<vmem>>, vector<1x128xf32>
    %6 = vector.broadcast %5 : vector<1x128xf32> to vector<18x128xf32>
    %7 = arith.addf %4, %6 : vector<18x128xf32>
    %cst = arith.constant 0.000000e+00 : f32
    %8 = vector.broadcast %cst : f32 to vector<18x128xf32>
    %9 = arith.maximumf %7, %8 : vector<18x128xf32>
    %10 = tpu.iota {dimensions = array<i32: 0>} : vector<18x1xi32>
    %c1_i32 = arith.constant 1 : i32
    %11 = vector.broadcast %c1_i32 : i32 to vector<18x1xi32>
    %12 = arith.cmpi sge, %10, %11 : vector<18x1xi32>
    %c16_i32 = arith.constant 16 : i32
    %13 = vector.broadcast %c16_i32 : i32 to vector<18x1xi32>
    %14 = arith.cmpi sle, %10, %13 : vector<18x1xi32>
    %15 = arith.andi %12, %14 : vector<18x1xi1>
    %cst_6 = arith.constant 0.000000e+00 : f32
    %16 = vector.shape_cast %15 : vector<18x1xi1> to vector<18x1xi1>
    %17 = vector.broadcast %16 : vector<18x1xi1> to vector<18x128xi1>
    %18 = vector.broadcast %cst_6 : f32 to vector<18x128xf32>
    %19 = arith.select %17, %9, %18 : vector<18x128xi1>, vector<18x128xf32>
    %20 = arith.truncf %19 : vector<18x128xf32> to vector<18x128xbf16>
    %cst_7 = arith.constant 0.000000e+00 : f32
    %21 = vector.broadcast %cst_7 : f32 to vector<16x128xf32>
    %22 = vector.extract_strided_slice %20 {offsets = [0, 0], sizes = [16, 128], strides = [1, 1]} : vector<18x128xbf16> to vector<16x128xbf16>
    %c0_8 = arith.constant 0 : index
    %c0_9 = arith.constant 0 : index
    %c0_10 = arith.constant 0 : index
    %23 = vector.load %arg2[%c0_8, %c0_9, %c0_10] : memref<3x128x128xbf16, #tpu.memory_space<vmem>>, vector<1x128x128xbf16>
    %24 = vector.shape_cast %23 : vector<1x128x128xbf16> to vector<128x128xbf16>
    %cst_11 = arith.constant dense<0.000000e+00> : vector<16x128xf32>
    %25 = tpu.matmul %22, %24, %cst_11 {dimension_numbers = #tpu.dot_dimension_numbers<[1], [0], [0], [1], [0, 0, 1, 1], [], []>} : vector<16x128xbf16>, vector<128x128xbf16>, vector<16x128xf32> -> vector<16x128xf32>
    %26 = arith.addf %21, %25 : vector<16x128xf32>
    %27 = vector.extract_strided_slice %20 {offsets = [1, 0], sizes = [16, 128], strides = [1, 1]} : vector<18x128xbf16> to vector<16x128xbf16>
    %c1 = arith.constant 1 : index
    %c0_12 = arith.constant 0 : index
    %c0_13 = arith.constant 0 : index
    %28 = vector.load %arg2[%c1, %c0_12, %c0_13] : memref<3x128x128xbf16, #tpu.memory_space<vmem>>, vector<1x128x128xbf16>
    %29 = vector.shape_cast %28 : vector<1x128x128xbf16> to vector<128x128xbf16>
    %cst_14 = arith.constant dense<0.000000e+00> : vector<16x128xf32>
    %30 = tpu.matmul %27, %29, %cst_14 {dimension_numbers = #tpu.dot_dimension_numbers<[1], [0], [0], [1], [0, 0, 1, 1], [], []>} : vector<16x128xbf16>, vector<128x128xbf16>, vector<16x128xf32> -> vector<16x128xf32>
    %31 = arith.addf %26, %30 : vector<16x128xf32>
    %32 = vector.extract_strided_slice %20 {offsets = [2, 0], sizes = [16, 128], strides = [1, 1]} : vector<18x128xbf16> to vector<16x128xbf16>
    %c2 = arith.constant 2 : index
    %c0_15 = arith.constant 0 : index
    %c0_16 = arith.constant 0 : index
    %33 = vector.load %arg2[%c2, %c0_15, %c0_16] : memref<3x128x128xbf16, #tpu.memory_space<vmem>>, vector<1x128x128xbf16>
    %34 = vector.shape_cast %33 : vector<1x128x128xbf16> to vector<128x128xbf16>
    %cst_17 = arith.constant dense<0.000000e+00> : vector<16x128xf32>
    %35 = tpu.matmul %32, %34, %cst_17 {dimension_numbers = #tpu.dot_dimension_numbers<[1], [0], [0], [1], [0, 0, 1, 1], [], []>} : vector<16x128xbf16>, vector<128x128xbf16>, vector<16x128xf32> -> vector<16x128xf32>
    %36 = arith.addf %31, %35 : vector<16x128xf32>
    %c0_18 = arith.constant 0 : index
    %c0_19 = arith.constant 0 : index
    %c0_20 = arith.constant 0 : index
    %37 = vector.load %arg5[%c0_18, %c0_19, %c0_20] : memref<1x16x128xf32, #tpu.memory_space<vmem>>, vector<1x16x128xf32>
    %38 = vector.shape_cast %37 : vector<1x16x128xf32> to vector<16x128xf32>
    %39 = vector.shape_cast %36 : vector<16x128xf32> to vector<1x16x128xf32>
    tpu.vector_store %arg5[%c0_18, %c0_19, %c0_20], %39 {strides = array<i32>} : memref<1x16x128xf32, #tpu.memory_space<vmem>>, vector<1x16x128xf32>,
    %cst_21 = arith.constant dense<0.000000e+00> : vector<128xf32>
    %40 = vector.multi_reduction <add>, %36, %cst_21 [0] : vector<16x128xf32> to vector<128xf32>
    %41 = vector.shape_cast %40 : vector<128xf32> to vector<1x128xf32>
    %c0_22 = arith.constant 0 : index
    %c0_23 = arith.constant 0 : index
    %c0_24 = arith.constant 0 : index
    %42 = vector.load %arg6[%c0_22, %c0_23, %c0_24] : memref<1x2x128xf32, #tpu.memory_space<vmem>>, vector<1x1x128xf32>
    %43 = vector.shape_cast %42 : vector<1x1x128xf32> to vector<1x128xf32>
    %44 = vector.shape_cast %41 : vector<1x128xf32> to vector<1x1x128xf32>
    tpu.vector_store %arg6[%c0_22, %c0_23, %c0_24], %44 {strides = array<i32>} : memref<1x2x128xf32, #tpu.memory_space<vmem>>, vector<1x1x128xf32>,
    %45 = arith.mulf %36, %36 : vector<16x128xf32>
    %cst_25 = arith.constant dense<0.000000e+00> : vector<128xf32>
    %46 = vector.multi_reduction <add>, %45, %cst_25 [0] : vector<16x128xf32> to vector<128xf32>
    %47 = vector.shape_cast %46 : vector<128xf32> to vector<1x128xf32>
    %c0_26 = arith.constant 0 : index
    %c1_27 = arith.constant 1 : index
    %c0_28 = arith.constant 0 : index
    %48 = vector.load %arg6[%c0_26, %c1_27, %c0_28] : memref<1x2x128xf32, #tpu.memory_space<vmem>>, vector<1x1x128xf32>
    %49 = vector.shape_cast %48 : vector<1x1x128xf32> to vector<1x128xf32>
    %50 = vector.shape_cast %47 : vector<1x128xf32> to vector<1x1x128xf32>
    tpu.vector_store %arg6[%c0_26, %c1_27, %c0_28], %50 {strides = array<i32>} : memref<1x2x128xf32, #tpu.memory_space<vmem>>, vector<1x1x128xf32>,
    return
  }
  func.func @transform_0(%arg0: i32) -> (i32, i32, i32) {
    %c0_i32 = arith.constant 0 : i32
    %c0_i32_0 = arith.constant 0 : i32
    %c0_i32_1 = arith.constant 0 : i32
    return %arg0, %c0_i32, %c0_i32_0 : i32, i32, i32
  }
  func.func @transform_1(%arg0: i32) -> (i32, i32, i32) {
    %c0_i32 = arith.constant 0 : i32
    %c0_i32_0 = arith.constant 0 : i32
    %c0_i32_1 = arith.constant 0 : i32
    %c0_i32_2 = arith.constant 0 : i32
    return %c0_i32, %c0_i32_0, %c0_i32_1 : i32, i32, i32
  }
  func.func @transform_2(%arg0: i32) -> (i32, i32) {
    %c0_i32 = arith.constant 0 : i32
    %c0_i32_0 = arith.constant 0 : i32
    %c0_i32_1 = arith.constant 0 : i32
    return %c0_i32, %c0_i32_0 : i32, i32
  }
  func.func @transform_3(%arg0: i32) -> (i32, i32) {
    %c0_i32 = arith.constant 0 : i32
    %c0_i32_0 = arith.constant 0 : i32
    %c0_i32_1 = arith.constant 0 : i32
    return %c0_i32, %c0_i32_0 : i32, i32
  }
  func.func @transform_4(%arg0: i32) -> (i32, i32, i32) {
    %c0_i32 = arith.constant 0 : i32
    %c0_i32_0 = arith.constant 0 : i32
    %c0_i32_1 = arith.constant 0 : i32
    return %arg0, %c0_i32, %c0_i32_0 : i32, i32, i32
  }
  func.func @transform_5(%arg0: i32) -> (i32, i32, i32) {
    %c0_i32 = arith.constant 0 : i32
    %c0_i32_0 = arith.constant 0 : i32
    %c0_i32_1 = arith.constant 0 : i32
    return %arg0, %c0_i32, %c0_i32_0 : i32, i32, i32
  }
}

module attributes {stable_mosaic.version = 11 : i64} {
  func.func @out_proj_kernel(%arg0: i32, %arg1: memref<1x16x128xf32, #tpu.memory_space<vmem>>, %arg2: memref<1x16x64xf32, #tpu.memory_space<vmem>>, %arg3: memref<64x128xbf16, #tpu.memory_space<vmem>>, %arg4: memref<1x128xf32, #tpu.memory_space<vmem>>, %arg5: memref<1x128xf32, #tpu.memory_space<vmem>>, %arg6: memref<1x128xf32, #tpu.memory_space<vmem>>, %arg7: memref<1x16x128xf32, #tpu.memory_space<vmem>>) attributes {dimension_semantics = [#tpu.dimension_semantics<parallel>], iteration_bounds = array<i64: 2>, scalar_prefetch = 0 : i64, scratch_operands = 0 : i64, tpu.core_type = #tpu.core_type<tc>, window_params = [{transform_indices = @transform_0, window_bounds = array<i64: 1, 16, 128>}, {transform_indices = @transform_1, window_bounds = array<i64: 1, 16, 64>}, {pipeline_mode = #tpu.pipeline_mode<synchronous>, transform_indices = @transform_2, window_bounds = array<i64: 64, 128>}, {pipeline_mode = #tpu.pipeline_mode<synchronous>, transform_indices = @transform_3, window_bounds = array<i64: 1, 128>}, {pipeline_mode = #tpu.pipeline_mode<synchronous>, transform_indices = @transform_4, window_bounds = array<i64: 1, 128>}, {pipeline_mode = #tpu.pipeline_mode<synchronous>, transform_indices = @transform_5, window_bounds = array<i64: 1, 128>}, {transform_indices = @transform_6, window_bounds = array<i64: 1, 16, 128>}]} {
    %c0 = arith.constant 0 : index
    %c0_0 = arith.constant 0 : index
    %c0_1 = arith.constant 0 : index
    %0 = vector.load %arg1[%c0, %c0_0, %c0_1] : memref<1x16x128xf32, #tpu.memory_space<vmem>>, vector<1x16x128xf32>
    %1 = vector.shape_cast %0 : vector<1x16x128xf32> to vector<16x128xf32>
    %c0_2 = arith.constant 0 : index
    %c0_3 = arith.constant 0 : index
    %2 = vector.load %arg5[%c0_2, %c0_3] : memref<1x128xf32, #tpu.memory_space<vmem>>, vector<1x128xf32>
    %3 = vector.broadcast %2 : vector<1x128xf32> to vector<16x128xf32>
    %4 = arith.mulf %1, %3 : vector<16x128xf32>
    %c0_4 = arith.constant 0 : index
    %c0_5 = arith.constant 0 : index
    %5 = vector.load %arg6[%c0_4, %c0_5] : memref<1x128xf32, #tpu.memory_space<vmem>>, vector<1x128xf32>
    %6 = vector.broadcast %5 : vector<1x128xf32> to vector<16x128xf32>
    %7 = arith.addf %4, %6 : vector<16x128xf32>
    %c0_6 = arith.constant 0 : index
    %c0_7 = arith.constant 0 : index
    %c0_8 = arith.constant 0 : index
    %8 = vector.load %arg2[%c0_6, %c0_7, %c0_8] : memref<1x16x64xf32, #tpu.memory_space<vmem>>, vector<1x16x64xf32>
    %9 = vector.shape_cast %8 : vector<1x16x64xf32> to vector<16x64xf32>
    %10 = arith.truncf %9 : vector<16x64xf32> to vector<16x64xbf16>
    %c0_9 = arith.constant 0 : index
    %c0_10 = arith.constant 0 : index
    %11 = vector.load %arg3[%c0_9, %c0_10] : memref<64x128xbf16, #tpu.memory_space<vmem>>, vector<64x128xbf16>
    %cst = arith.constant dense<0.000000e+00> : vector<16x128xf32>
    %12 = tpu.matmul %10, %11, %cst {dimension_numbers = #tpu.dot_dimension_numbers<[1], [0], [0], [1], [0, 0, 1, 1], [], []>} : vector<16x64xbf16>, vector<64x128xbf16>, vector<16x128xf32> -> vector<16x128xf32>
    %c0_11 = arith.constant 0 : index
    %c0_12 = arith.constant 0 : index
    %13 = vector.load %arg4[%c0_11, %c0_12] : memref<1x128xf32, #tpu.memory_space<vmem>>, vector<1x128xf32>
    %14 = vector.broadcast %13 : vector<1x128xf32> to vector<16x128xf32>
    %15 = arith.addf %12, %14 : vector<16x128xf32>
    %16 = arith.addf %7, %15 : vector<16x128xf32>
    %c0_13 = arith.constant 0 : index
    %c0_14 = arith.constant 0 : index
    %c0_15 = arith.constant 0 : index
    %17 = vector.load %arg7[%c0_13, %c0_14, %c0_15] : memref<1x16x128xf32, #tpu.memory_space<vmem>>, vector<1x16x128xf32>
    %18 = vector.shape_cast %17 : vector<1x16x128xf32> to vector<16x128xf32>
    %19 = vector.shape_cast %16 : vector<16x128xf32> to vector<1x16x128xf32>
    tpu.vector_store %arg7[%c0_13, %c0_14, %c0_15], %19 {strides = array<i32>} : memref<1x16x128xf32, #tpu.memory_space<vmem>>, vector<1x16x128xf32>,
    return
  }
  func.func @transform_0(%arg0: i32) -> (i32, i32, i32) {
    %c0_i32 = arith.constant 0 : i32
    %c0_i32_0 = arith.constant 0 : i32
    %c0_i32_1 = arith.constant 0 : i32
    return %arg0, %c0_i32, %c0_i32_0 : i32, i32, i32
  }
  func.func @transform_1(%arg0: i32) -> (i32, i32, i32) {
    %c0_i32 = arith.constant 0 : i32
    %c0_i32_0 = arith.constant 0 : i32
    %c0_i32_1 = arith.constant 0 : i32
    return %arg0, %c0_i32, %c0_i32_0 : i32, i32, i32
  }
  func.func @transform_2(%arg0: i32) -> (i32, i32) {
    %c0_i32 = arith.constant 0 : i32
    %c0_i32_0 = arith.constant 0 : i32
    %c0_i32_1 = arith.constant 0 : i32
    return %c0_i32, %c0_i32_0 : i32, i32
  }
  func.func @transform_3(%arg0: i32) -> (i32, i32) {
    %c0_i32 = arith.constant 0 : i32
    %c0_i32_0 = arith.constant 0 : i32
    %c0_i32_1 = arith.constant 0 : i32
    return %c0_i32, %c0_i32_0 : i32, i32
  }
  func.func @transform_4(%arg0: i32) -> (i32, i32) {
    %c0_i32 = arith.constant 0 : i32
    %c0_i32_0 = arith.constant 0 : i32
    %c0_i32_1 = arith.constant 0 : i32
    return %c0_i32, %c0_i32_0 : i32, i32
  }
  func.func @transform_5(%arg0: i32) -> (i32, i32) {
    %c0_i32 = arith.constant 0 : i32
    %c0_i32_0 = arith.constant 0 : i32
    %c0_i32_1 = arith.constant 0 : i32
    return %c0_i32, %c0_i32_0 : i32, i32
  }
  func.func @transform_6(%arg0: i32) -> (i32, i32, i32) {
    %c0_i32 = arith.constant 0 : i32
    %c0_i32_0 = arith.constant 0 : i32
    %c0_i32_1 = arith.constant 0 : i32
    return %arg0, %c0_i32, %c0_i32_0 : i32, i32, i32
  }
}

</mosaic_0001>

<llo_original>
// kernel: residual_block.3
$region0: #{residual_block.3}
  #allocation0 [shape = 'u32[]', space=smem, size = 0x4, offset = 0x4, fixed_abs, tag = 'smem constant byte address 0x4 - core index']
  #allocation1 [shape = 'u32[144,128]{1,0:T(1,128)}', space=vmem, size = 0x12000, scoped, tag = 'internal scratch']
  %s0 = inlined_call_operand.vmem [shape: f32[2,18,64], index: 0, kind: input, shape index: {}]
  %s1 = inlined_call_operand.vmem [shape: bf16[3,64,128], index: 1, kind: input, shape index: {}]
  %s2 = inlined_call_operand.vmem [shape: f32[2,18,128], index: 2, kind: output, shape index: {0}]
  %s3 = inlined_call_operand.vmem [shape: f32[2,2,128], index: 3, kind: output, shape index: {1}]
  %4 = xla_tuple %s2, %s3
  %s5 = sld [smem:[#allocation0]]
  $region49: #{residual_block.3} parent=0
    _
  %s7 = ssub.s32 1, %s5
  %s8 = scalar_select 0, %s7, %s5
  loop: start=0, step=1, limit=4
  $region2: #{residual_block.3} parent=0 // loop_pre_header
    _
  $region3: #{residual_block.3} parent=0 // loop_header
    %s10 = sphi 0, %s14
    %p11 = scmp.ge.s32.totalorder %s10, 4
    %s20 = sphi 0, %s22
    %s23 = sphi 0, %s20
    %s24 = sphi 0, %s23
    %s40 = sphi 0, %s24
    %s44 = sphi 0, %s44
    %s46 = sphi 0, %s44
    %s47 = sphi 0, %s46
    %s61 = sphi 0, %s47
    %s67 = sphi 0, %s69
    %s70 = sphi 0, %s67
    %s71 = sphi 0, %s70
    %s87 = sphi 0, %s71
    %s93 = sphi 0, %s95
    %s96 = sphi 0, %s93
    %s97 = sphi 0, %s96
    %s113 = sphi 0, %s97
  $region4: #{residual_block.3} parent=0 // loop_header_branch
    %13 = sbr.rel (%p11) target = $region8
  $region5: #{residual_block.3} parent=0 // loop_body
    %s15 = ssub.s32 %s10, 1
    %s16 = ssub.s32 %s10, 2
    %s17 = sadd.s32 %s10, 1
    %s18 = ssub.s32 %s10, %s17
    %p19 = scmp.eq.s32.totalorder %s18, 0
    %s21 = sadd.s32 %s20, 1
    %s22 = scalar_select %p19, %s20, %s21
    %p25 = pneg %p19
    %p26 = scmp.eq.s32.totalorder %s10, 1
    %p27 = por %p25, %p26
    %p28 = scmp.ne.s32.totalorder %s20, %s23
    %p29 = scmp.eq.s32.totalorder %s10, 0
    %p30 = por %p28, %p29
    %p31 = scmp.ne.s32.totalorder %s20, %s23
    %p32 = scmp.eq.s32.totalorder %s15, 1
    %p33 = por %p31, %p32
    %p34 = scmp.ne.s32.totalorder %s23, %s24
    %p35 = scmp.eq.s32.totalorder %s15, 0
    %p36 = por %p34, %p35
    %p37 = scmp.ne.s32.totalorder %s23, %s24
    %p38 = scmp.eq.s32.totalorder %s16, 1
    %p39 = por %p37, %p38
    %p41 = scmp.ne.s32.totalorder %s24, %s40
    %p42 = scmp.eq.s32.totalorder %s16, 0
    %p43 = por %p41, %p42
    %s45 = sadd.s32 %s44, 1
    %p48 = scmp.eq.s32.totalorder %s10, 1
    %p49 = scmp.ne.s32.totalorder %s44, %s46
    %p50 = scmp.eq.s32.totalorder %s10, 0
    %p51 = por %p49, %p50
    %p52 = scmp.ne.s32.totalorder %s44, %s46
    %p53 = scmp.eq.s32.totalorder %s15, 1
    %p54 = por %p52, %p53
    %p55 = scmp.ne.s32.totalorder %s46, %s47
    %p56 = scmp.eq.s32.totalorder %s15, 0
    %p57 = por %p55, %p56
    %p58 = scmp.ne.s32.totalorder %s46, %s47
    %p59 = scmp.eq.s32.totalorder %s16, 1
    %p60 = por %p58, %p59
    %p62 = scmp.ne.s32.totalorder %s47, %s61
    %p63 = scmp.eq.s32.totalorder %s16, 0
    %p64 = por %p62, %p63
    %s65 = ssub.s32 %s10, %s17
    %p66 = scmp.eq.s32.totalorder %s65, 0
    %s68 = sadd.s32 %s67, 1
    %s69 = scalar_select %p66, %s67, %s68
    %p72 = pneg %p66
    %p73 = scmp.eq.s32.totalorder %s10, 1
    %p74 = por %p72, %p73
    %p75 = scmp.ne.s32.totalorder %s67, %s70
    %p76 = scmp.eq.s32.totalorder %s10, 0
    %p77 = por %p75, %p76
    %p78 = scmp.ne.s32.totalorder %s67, %s70
    %p79 = scmp.eq.s32.totalorder %s15, 1
    %p80 = por %p78, %p79
    %p81 = scmp.ne.s32.totalorder %s70, %s71
    %p82 = scmp.eq.s32.totalorder %s15, 0
    %p83 = por %p81, %p82
    %p84 = scmp.ne.s32.totalorder %s70, %s71
    %p85 = scmp.eq.s32.totalorder %s16, 1
    %p86 = por %p84, %p85
    %p88 = scmp.ne.s32.totalorder %s71, %s87
    %p89 = scmp.eq.s32.totalorder %s16, 0
    %p90 = por %p88, %p89
    %s91 = ssub.s32 %s10, %s17
    %p92 = scmp.eq.s32.totalorder %s91, 0
    %s94 = sadd.s32 %s93, 1
    %s95 = scalar_select %p92, %s93, %s94
    %p98 = pneg %p92
    %p99 = scmp.eq.s32.totalorder %s10, 1
    %p100 = por %p98, %p99
    %p101 = scmp.ne.s32.totalorder %s93, %s96
    %p102 = scmp.eq.s32.totalorder %s10, 0
    %p103 = por %p101, %p102
    %p104 = scmp.ne.s32.totalorder %s93, %s96
    %p105 = scmp.eq.s32.totalorder %s15, 1
    %p106 = por %p104, %p105
    %p107 = scmp.ne.s32.totalorder %s96, %s97
    %p108 = scmp.eq.s32.totalorder %s15, 0
    %p109 = por %p107, %p108
    %p110 = scmp.ne.s32.totalorder %s96, %s97
    %p111 = scmp.eq.s32.totalorder %s16, 1
    %p112 = por %p110, %p111
    %p114 = scmp.ne.s32.totalorder %s97, %s113
    %p115 = scmp.eq.s32.totalorder %s16, 0
    %p116 = por %p114, %p115
    %p117 = scmp.le.s32.totalorder 1, %s10
    %p118 = scmp.lt.s32.totalorder %s10, 3
    %p119 = pnand %p117, %p118
    %p120 = pneg %p119
    // Predicated region
    $region9: #{residual_block.3} parent=5 // pred_check
      _
    $region10: #{residual_block.3} parent=5 // pred_check_branch
      %122 = sbr.rel (%p119) target = $region12
    $region11: #{residual_block.3} parent=5 // pred_region
      %s123 = ssub.s32 %s10, 1
      // Predicated region
      $region13: #{residual_block.3} parent=11 // pred_check
        %p124 = pneg %p57
      $region14: #{residual_block.3} parent=11 // pred_check_branch
        %126 = sbr.rel (%p124) target = $region16
      $region15: #{residual_block.3} parent=11 // pred_region
        _
      $region16: #{residual_block.3} parent=11 // pred_fallthru
        _
    $region12: #{residual_block.3} parent=5 // pred_fallthru
      _
    %p127 = scmp.lt.s32.totalorder %s10, 2
    // Predicated region
    $region17: #{residual_block.3} parent=5 // pred_check
      %p128 = pneg %p127
    $region18: #{residual_block.3} parent=5 // pred_check_branch
      %130 = sbr.rel (%p128) target = $region20
    $region19: #{residual_block.3} parent=5 // pred_region
      // Predicated region
      $region21: #{residual_block.3} parent=19 // pred_check
        %p131 = pneg %p30
      $region22: #{residual_block.3} parent=19 // pred_check_branch
        %133 = sbr.rel (%p131) target = $region24
      $region23: #{residual_block.3} parent=19 // pred_region
        %p134 = scmp.lt.s32.totalorder %s10, 1
        %s135 = scalar_select %p134, %s10, 1
        %s136 = smul.addr %s135, 3
        %s137 = smul.addr %s136, 8
        %s138 = scalar_lea.vmem %s0, %s137
      $region24: #{residual_block.3} parent=19 // pred_fallthru
        _
    $region20: #{residual_block.3} parent=5 // pred_fallthru
      _
    %p139 = scmp.le.s32.totalorder 1, %s10
    %p140 = scmp.lt.s32.totalorder %s10, 3
    %p141 = pnand %p139, %p140
    %p142 = pneg %p141
    // Predicated region
    $region25: #{residual_block.3} parent=5 // pred_check
      _
    $region26: #{residual_block.3} parent=5 // pred_check_branch
      %144 = sbr.rel (%p141) target = $region28
    $region27: #{residual_block.3} parent=5 // pred_region
      %s145 = ssub.s32 %s10, 1
      %p146 = scmp.lt.s32.totalorder %s15, 1
      %s147 = scalar_select %p146, %s15, 1
      %s148 = smul.addr %s147, 3
      %s149 = smul.addr %s148, 8
      %s150 = scalar_lea.vmem %s0, %s149
      %p151 = pneg %p36
      %p152 = pneg %p33
      %p153 = pneg %p57
      %p154 = pneg %p54
      %p155 = pneg %p83
      %p156 = pneg %p80
      %p157 = scmp.lt.s32.totalorder %s15, 1
      %s158 = scalar_select %p157, %s15, 1
      %s159 = smul.addr %s158, 3
      %s160 = smul.addr %s159, 8
      %s161 = scalar_lea.vmem %s2, %s160
      %p162 = pneg %p109
      %p163 = pneg %p106
      %p164 = scmp.lt.s32.totalorder %s15, 1
      %s165 = scalar_select %p164, %s15, 1
      %s166 = smul.addr %s165, 2
      %s167 = scalar_lea.vmem %s3, %s166
      %p168 = scmp.lt.s32.totalorder %s15, 1
      %s169 = scalar_select %p168, %s15, 1
      %s170 = smul.addr %s169, 3
      %s171 = smul.addr %s170, 8
      %s172 = scalar_lea.vmem %s0, %s171
      %p173 = scmp.lt.s32.totalorder %s15, 1
      %s174 = scalar_select %p173, %s15, 1
      %s175 = smul.addr %s174, 3
      %s176 = smul.addr %s175, 8
      %s177 = scalar_lea.vmem %s2, %s176
      %p178 = scmp.lt.s32.totalorder %s15, 1
      %s179 = scalar_select %p178, %s15, 1
      %s180 = smul.addr %s179, 2
      %s181 = scalar_lea.vmem %s3, %s180
      %v183 = vld [vmem:[%s172] sm:$0xff]
      %v184 = vld [vmem:[%s172 + $0x8] sm:$0xff]
      %v185 = vld [vmem:[%s172 + $0x10] sm:$0x3]
      %v186 = vpack.c.bf16 %v184, %v183
      %v187 = vpack.c.bf16 %v185, %v185
      %v188 = vld [vmem:[%s1] sm:$0xf]
      %v189 = vld [vmem:[%s1 + $0x4] sm:$0xf]
      %v190 = vld [vmem:[%s1 + $0x8] sm:$0xf]
      %v191 = vld [vmem:[%s1 + $0xc] sm:$0xf]
      %v192 = vld [vmem:[%s1 + $0x10] sm:$0xf]
      %v193 = vld [vmem:[%s1 + $0x14] sm:$0xf]
      %v194 = vld [vmem:[%s1 + $0x18] sm:$0xf]
      %v195 = vld [vmem:[%s1 + $0x1c] sm:$0xf]
      %s196 = scalar_lea.vmem %s1, 32
      %v197 = vld [vmem:[%s196] sm:$0xf]
      %v198 = vld [vmem:[%s196 + $0x4] sm:$0xf]
      %v199 = vld [vmem:[%s196 + $0x8] sm:$0xf]
      %v200 = vld [vmem:[%s196 + $0xc] sm:$0xf]
      %v201 = vld [vmem:[%s196 + $0x10] sm:$0xf]
      %v202 = vld [vmem:[%s196 + $0x14] sm:$0xf]
      %v203 = vld [vmem:[%s196 + $0x18] sm:$0xf]
      %v204 = vld [vmem:[%s196 + $0x1c] sm:$0xf]
      %vm205 = vsmask.f32 7424
      %v207 = vshrl.u32 %v186, 16
      %v209 = vshll.u32 %v186, 16
      %v211 = vrot.slane %v209, 1
      %v212 = vor.u32 %v207, %v211
      %v214 = vshll.u32 %v187, 16
      %v216 = vrot.slane %v214, 1
      %v217 = vsel %vm205, %v212, %v216
      %v226 = vunpack.c.l.b16 %v197
      %v227 = vunpack.c.l.b16 %v198
      %v228 = vunpack.c.l.b16 %v199
      %v229 = vunpack.c.l.b16 %v200
      %v230 = vunpack.c.l.b16 %v201
      %v231 = vunpack.c.l.b16 %v202
      %v232 = vunpack.c.l.b16 %v203
      %v233 = vunpack.c.l.b16 %v204
      %v234 = vpack.c.b16 %v227, %v226
      %v235 = vpack.c.b16 %v229, %v228
      %v236 = vpack.c.b16 %v231, %v230
      %v237 = vpack.c.b16 %v233, %v232
      %vm242 = vcmask 523264
      %v244 = vsel %vm242, %v217, 0
      %246 = vmatprep.subr.bf16.mxu0 0
      %247 = vmatpush1.bf16.msra.mxu0 %v234
      %248 = vmatprep.subr.bf16.mxu0 0
      %249 = vmatpush1.bf16.msra.mxu0 %v235
      %250 = vmatprep.subr.bf16.mxu0 0
      %251 = vmatpush1.bf16.msra.mxu0 %v236
      %252 = vmatprep.subr.bf16.mxu0 0
      %253 = vmatpush1.bf16.msra.mxu0 %v237
      %254 = vmatprep.subr.bf16.mxu0 0
      %255 = vmatpush1.bf16.msra.mxu0 0
      %256 = vmatprep.subr.bf16.mxu0 0
      %257 = vmatpush1.bf16.msra.mxu0 0
      %258 = vmatprep.subr.bf16.mxu0 0
      %259 = vmatpush1.bf16.msra.mxu0 0
      %260 = vmatprep.subr.bf16.mxu0 0
      %261 = vmatpush1.bf16.msra.mxu0 0
      %262 = vmatprep.subr.bf16.mxu0 0
      %263 = vmatpush1.bf16.msra.mxu0 0
      %264 = vmatprep.subr.bf16.mxu0 0
      %265 = vmatpush1.bf16.msra.mxu0 0
      %266 = vmatprep.subr.bf16.mxu0 0
      %267 = vmatpush1.bf16.msra.mxu0 0
      %268 = vmatprep.subr.bf16.mxu0 0
      %269 = vmatpush1.bf16.msra.mxu0 0
      %270 = vmatprep.subr.bf16.mxu0 0
      %271 = vmatpush1.bf16.msra.mxu0 0
      %272 = vmatprep.subr.bf16.mxu0 0
      %273 = vmatpush1.bf16.msra.mxu0 0
      %274 = vmatprep.subr.bf16.mxu0 0
      %275 = vmatpush1.bf16.msra.mxu0 0
      %276 = vmatprep.subr.bf16.mxu0 0
      %277 = vmatpush1.bf16.msra.mxu0 0
      %278 = vmatprep.mubr.bf16.mxu0 0
      %279 = vmatmul.mubr.bf16.gmra.mrb[0].mxu0 %v244
      %v280 = vpop.f32.mrb[0].mxu0
      %v281 = vadd.f32 0.0, %v280
      %v282 = vpop.f32.mrb[0].mxu0
      %v283 = vpop.f32.mrb[0].mxu0
      %v284 = vadd.f32 0.0, %v283
      %v285 = vpop.f32.mrb[0].mxu0
      %286 = vdwg.mxu0
      %v295 = vunpack.c.l.b16 %v188
      %v296 = vunpack.c.l.b16 %v189
      %v297 = vunpack.c.l.b16 %v190
      %v298 = vunpack.c.l.b16 %v191
      %v299 = vunpack.c.l.b16 %v192
      %v300 = vunpack.c.l.b16 %v193
      %v301 = vunpack.c.l.b16 %v194
      %v302 = vunpack.c.l.b16 %v195
      %v303 = vpack.c.b16 %v296, %v295
      %v304 = vpack.c.b16 %v298, %v297
      %v305 = vpack.c.b16 %v300, %v299
      %v306 = vpack.c.b16 %v302, %v301
      %v311 = vsel %vm242, %v186, 0
      %313 = vmatprep.subr.bf16.mxu0 0
      %314 = vmatpush1.bf16.msra.mxu0 %v303
      %315 = vmatprep.subr.bf16.mxu0 0
      %316 = vmatpush1.bf16.msra.mxu0 %v304
      %317 = vmatprep.subr.bf16.mxu0 0
      %318 = vmatpush1.bf16.msra.mxu0 %v305
      %319 = vmatprep.subr.bf16.mxu0 0
      %320 = vmatpush1.bf16.msra.mxu0 %v306
      %321 = vmatprep.subr.bf16.mxu0 0
      %322 = vmatpush1.bf16.msra.mxu0 0
      %323 = vmatprep.subr.bf16.mxu0 0
      %324 = vmatpush1.bf16.msra.mxu0 0
      %325 = vmatprep.subr.bf16.mxu0 0
      %326 = vmatpush1.bf16.msra.mxu0 0
      %327 = vmatprep.subr.bf16.mxu0 0
      %328 = vmatpush1.bf16.msra.mxu0 0
      %329 = vmatprep.subr.bf16.mxu0 0
      %330 = vmatpush1.bf16.msra.mxu0 0
      %331 = vmatprep.subr.bf16.mxu0 0
      %332 = vmatpush1.bf16.msra.mxu0 0
      %333 = vmatprep.subr.bf16.mxu0 0
      %334 = vmatpush1.bf16.msra.mxu0 0
      %335 = vmatprep.subr.bf16.mxu0 0
      %336 = vmatpush1.bf16.msra.mxu0 0
      %337 = vmatprep.subr.bf16.mxu0 0
      %338 = vmatpush1.bf16.msra.mxu0 0
      %339 = vmatprep.subr.bf16.mxu0 0
      %340 = vmatpush1.bf16.msra.mxu0 0
      %341 = vmatprep.subr.bf16.mxu0 0
      %342 = vmatpush1.bf16.msra.mxu0 0
      %343 = vmatprep.subr.bf16.mxu0 0
      %344 = vmatpush1.bf16.msra.mxu0 0
      %345 = vmatprep.mubr.bf16.mxu0 0
      %346 = vmatmul.mubr.bf16.gmra.mrb[0].mxu0 %v311
      %v347 = vpop.f32.mrb[0].mxu0
      %v348 = vadd.f32 %v281, %v347
      %v349 = vpop.f32.mrb[0].mxu0
      %v350 = vpop.f32.mrb[0].mxu0
      %v351 = vadd.f32 %v284, %v350
      %v352 = vpop.f32.mrb[0].mxu0
      %353 = vdwg.mxu0
      %s354 = scalar_lea.vmem %s1, 64
      %v355 = vld [vmem:[%s354] sm:$0xf]
      %v356 = vld [vmem:[%s354 + $0x4] sm:$0xf]
      %v357 = vld [vmem:[%s354 + $0x8] sm:$0xf]
      %v358 = vld [vmem:[%s354 + $0xc] sm:$0xf]
      %v359 = vld [vmem:[%s354 + $0x10] sm:$0xf]
      %v360 = vld [vmem:[%s354 + $0x14] sm:$0xf]
      %v361 = vld [vmem:[%s354 + $0x18] sm:$0xf]
      %v362 = vld [vmem:[%s354 + $0x1c] sm:$0xf]
      %vm365 = vcmask 1046528
      %v366 = vrot.slane %v186, 1
      %v367 = vrot.slane %v187, 1
      %v368 = vsel %vm365, %v366, %v367
      %v377 = vunpack.c.l.b16 %v355
      %v378 = vunpack.c.l.b16 %v356
      %v379 = vunpack.c.l.b16 %v357
      %v380 = vunpack.c.l.b16 %v358
      %v381 = vunpack.c.l.b16 %v359
      %v382 = vunpack.c.l.b16 %v360
      %v383 = vunpack.c.l.b16 %v361
      %v384 = vunpack.c.l.b16 %v362
      %v385 = vpack.c.b16 %v378, %v377
      %v386 = vpack.c.b16 %v380, %v379
      %v387 = vpack.c.b16 %v382, %v381
      %v388 = vpack.c.b16 %v384, %v383
      %v394 = vsel %vm242, %v368, 0
      %396 = vmatprep.subr.bf16.mxu0 0
      %397 = vmatpush1.bf16.msra.mxu0 %v385
      %398 = vmatprep.subr.bf16.mxu0 0
      %399 = vmatpush1.bf16.msra.mxu0 %v386
      %400 = vmatprep.subr.bf16.mxu0 0
      %401 = vmatpush1.bf16.msra.mxu0 %v387
      %402 = vmatprep.subr.bf16.mxu0 0
      %403 = vmatpush1.bf16.msra.mxu0 %v388
      %404 = vmatprep.subr.bf16.mxu0 0
      %405 = vmatpush1.bf16.msra.mxu0 0
      %406 = vmatprep.subr.bf16.mxu0 0
      %407 = vmatpush1.bf16.msra.mxu0 0
      %408 = vmatprep.subr.bf16.mxu0 0
      %409 = vmatpush1.bf16.msra.mxu0 0
      %410 = vmatprep.subr.bf16.mxu0 0
      %411 = vmatpush1.bf16.msra.mxu0 0
      %412 = vmatprep.subr.bf16.mxu0 0
      %413 = vmatpush1.bf16.msra.mxu0 0
      %414 = vmatprep.subr.bf16.mxu0 0
      %415 = vmatpush1.bf16.msra.mxu0 0
      %416 = vmatprep.subr.bf16.mxu0 0
      %417 = vmatpush1.bf16.msra.mxu0 0
      %418 = vmatprep.subr.bf16.mxu0 0
      %419 = vmatpush1.bf16.msra.mxu0 0
      %420 = vmatprep.subr.bf16.mxu0 0
      %421 = vmatpush1.bf16.msra.mxu0 0
      %422 = vmatprep.subr.bf16.mxu0 0
      %423 = vmatpush1.bf16.msra.mxu0 0
      %424 = vmatprep.subr.bf16.mxu0 0
      %425 = vmatpush1.bf16.msra.mxu0 0
      %426 = vmatprep.subr.bf16.mxu0 0
      %427 = vmatpush1.bf16.msra.mxu0 0
      %428 = vmatprep.mubr.bf16.mxu0 0
      %429 = vmatmul.mubr.bf16.gmra.mrb[0].mxu0 %v394
      %v430 = vpop.f32.mrb[0].mxu0
      %v431 = vadd.f32 0.0, %v430
      %v432 = vpop.f32.mrb[0].mxu0
      %v433 = vpop.f32.mrb[0].mxu0
      %v434 = vadd.f32 0.0, %v433
      %v435 = vpop.f32.mrb[0].mxu0
      %436 = vdwg.mxu0
      %v437 = vadd.f32 %v348, %v431
      %v438 = vadd.f32 %v351, %v434
      %439 = vst [vmem:[%s177] sm:$0x1] 0.0
      %440 = vst [vmem:[%s177 + $0x11] sm:$0x1] 0.0
      %441 = vst [vmem:[%s177 + $0x1] sm:$0xff] %v437
      %442 = vst [vmem:[%s177 + $0x9] sm:$0xff] %v438
      %v443 = vadd.f32 %v437, %v438
      %v444 = vrot.slane %v443, 4
      %v445 = vadd.f32 %v443, %v444
      %v446 = vrot.slane %v445, 2
      %v447 = vadd.f32 %v445, %v446
      %v448 = vrot.slane %v447, 1
      %v449 = vadd.f32 %v447, %v448
      %450 = vst [vmem:[%s181] sm:$0x1] %v449
      %v451 = vmul.f32 %v437, %v437
      %v452 = vmul.f32 %v438, %v438
      %v453 = vadd.f32 %v451, %v452
      %v454 = vrot.slane %v453, 4
      %v455 = vadd.f32 %v453, %v454
      %v456 = vrot.slane %v455, 2
      %v457 = vadd.f32 %v455, %v456
      %v458 = vrot.slane %v457, 1
      %v459 = vadd.f32 %v457, %v458
      %460 = vst [vmem:[%s181 + $0x1] sm:$0x1] %v459
      %p461 = scmp.lt.s32.totalorder %s15, 1
      %s462 = scalar_select %p461, %s15, 1
      %s463 = smul.addr %s462, 3
      %s464 = smul.addr %s463, 8
      %s465 = scalar_lea.vmem %s2, %s464
      %p466 = scmp.lt.s32.totalorder %s15, 1
      %s467 = scalar_select %p466, %s15, 1
      %s468 = smul.addr %s467, 2
      %s469 = scalar_lea.vmem %s3, %s468
      // Predicated region
      $region29: #{residual_block.3} parent=27 // pred_check
        %p470 = pneg %p80
      $region30: #{residual_block.3} parent=27 // pred_check_branch
        %472 = sbr.rel (%p470) target = $region32
      $region31: #{residual_block.3} parent=27 // pred_region
        _
      $region32: #{residual_block.3} parent=27 // pred_fallthru
        _
      // Predicated region
      $region33: #{residual_block.3} parent=27 // pred_check
        %p473 = pneg %p106
      $region34: #{residual_block.3} parent=27 // pred_check_branch
        %475 = sbr.rel (%p473) target = $region36
      $region35: #{residual_block.3} parent=27 // pred_region
        _
      $region36: #{residual_block.3} parent=27 // pred_fallthru
        _
    $region28: #{residual_block.3} parent=5 // pred_fallthru
      _
    %p476 = scmp.le.s32.totalorder 2, %s10
    // Predicated region
    $region37: #{residual_block.3} parent=5 // pred_check
      %p477 = pneg %p476
    $region38: #{residual_block.3} parent=5 // pred_check_branch
      %479 = sbr.rel (%p477) target = $region40
    $region39: #{residual_block.3} parent=5 // pred_region
      %s480 = ssub.s32 %s10, 2
      // Predicated region
      $region41: #{residual_block.3} parent=39 // pred_check
        %p481 = pneg %p86
      $region42: #{residual_block.3} parent=39 // pred_check_branch
        %483 = sbr.rel (%p481) target = $region44
      $region43: #{residual_block.3} parent=39 // pred_region
        %p484 = scmp.lt.s32.totalorder %s16, 1
        %s485 = scalar_select %p484, %s16, 1
        %s486 = smul.addr %s485, 3
        %s487 = smul.addr %s486, 8
        %s488 = scalar_lea.vmem %s2, %s487
      $region44: #{residual_block.3} parent=39 // pred_fallthru
        _
      // Predicated region
      $region45: #{residual_block.3} parent=39 // pred_check
        %p489 = pneg %p112
      $region46: #{residual_block.3} parent=39 // pred_check_branch
        %491 = sbr.rel (%p489) target = $region48
      $region47: #{residual_block.3} parent=39 // pred_region
        %p492 = scmp.lt.s32.totalorder %s16, 1
        %s493 = scalar_select %p492, %s16, 1
        %s494 = smul.addr %s493, 2
        %s495 = scalar_lea.vmem %s3, %s494
      $region48: #{residual_block.3} parent=39 // pred_fallthru
        _
    $region40: #{residual_block.3} parent=5 // pred_fallthru
      _
  $region6: #{residual_block.3} parent=0 // loop_footer
    %s14 = sadd.s32 1, %s10
  $region7: #{residual_block.3} parent=0 // loop_footer_branch
    %9 = sbr.rel target = $region3
  $region8: #{residual_block.3} parent=0 // loop_exit
    _

// kernel: residual_block.5
$region0: #{residual_block.5}
  #allocation0 [shape = 'u32[]', space=smem, size = 0x4, offset = 0x4, fixed_abs, tag = 'smem constant byte address 0x4 - core index']
  #allocation1 [shape = 'u32[144,128]{1,0:T(1,128)}', space=vmem, size = 0x12000, scoped, tag = 'internal scratch']
  %s0 = inlined_call_operand.vmem [shape: f32[2,16,128], index: 0, kind: input, shape index: {}]
  %s1 = inlined_call_operand.vmem [shape: f32[2,16,64], index: 1, kind: input, shape index: {}]
  %s2 = inlined_call_operand.vmem [shape: bf16[64,128], index: 2, kind: input, shape index: {}]
  %s3 = inlined_call_operand.vmem [shape: f32[1,128], index: 3, kind: input, shape index: {}]
  %s4 = inlined_call_operand.vmem [shape: f32[1,128], index: 4, kind: input, shape index: {}]
  %s5 = inlined_call_operand.vmem [shape: f32[1,128], index: 5, kind: input, shape index: {}]
  %s6 = inlined_call_operand.vmem [shape: f32[2,16,128], index: 6, kind: output, shape index: {}]
  %s7 = sld [smem:[#allocation0]]
  $region57: #{residual_block.5} parent=0
    _
  %s9 = ssub.s32 1, %s7
  %s10 = scalar_select 0, %s9, %s7
  loop: start=0, step=1, limit=4
  $region2: #{residual_block.5} parent=0 // loop_pre_header
    _
  $region3: #{residual_block.5} parent=0 // loop_header
    %s12 = sphi 0, %s16
    %p13 = scmp.ge.s32.totalorder %s12, 4
    %s22 = sphi 0, %s24
    %s25 = sphi 0, %s22
    %s26 = sphi 0, %s25
    %s42 = sphi 0, %s26
    %s48 = sphi 0, %s50
    %s51 = sphi 0, %s48
    %s52 = sphi 0, %s51
    %s68 = sphi 0, %s52
    %s72 = sphi 0, %s72
    %s74 = sphi 0, %s72
    %s75 = sphi 0, %s74
    %s89 = sphi 0, %s75
    %s93 = sphi 0, %s93
    %s95 = sphi 0, %s93
    %s96 = sphi 0, %s95
    %s110 = sphi 0, %s96
    %s114 = sphi 0, %s114
    %s116 = sphi 0, %s114
    %s117 = sphi 0, %s116
    %s131 = sphi 0, %s117
    %s135 = sphi 0, %s135
    %s137 = sphi 0, %s135
    %s138 = sphi 0, %s137
    %s152 = sphi 0, %s138
    %s158 = sphi 0, %s160
    %s161 = sphi 0, %s158
    %s162 = sphi 0, %s161
    %s178 = sphi 0, %s162
  $region4: #{residual_block.5} parent=0 // loop_header_branch
    %15 = sbr.rel (%p13) target = $region8
  $region5: #{residual_block.5} parent=0 // loop_body
    %s17 = ssub.s32 %s12, 1
    %s18 = ssub.s32 %s12, 2
    %s19 = sadd.s32 %s12, 1
    %s20 = ssub.s32 %s12, %s19
    %p21 = scmp.eq.s32.totalorder %s20, 0
    %s23 = sadd.s32 %s22, 1
    %s24 = scalar_select %p21, %s22, %s23
    %p27 = pneg %p21
    %p28 = scmp.eq.s32.totalorder %s12, 1
    %p29 = por %p27, %p28
    %p30 = scmp.ne.s32.totalorder %s22, %s25
    %p31 = scmp.eq.s32.totalorder %s12, 0
    %p32 = por %p30, %p31
    %p33 = scmp.ne.s32.totalorder %s22, %s25
    %p34 = scmp.eq.s32.totalorder %s17, 1
    %p35 = por %p33, %p34
    %p36 = scmp.ne.s32.totalorder %s25, %s26
    %p37 = scmp.eq.s32.totalorder %s17, 0
    %p38 = por %p36, %p37
    %p39 = scmp.ne.s32.totalorder %s25, %s26
    %p40 = scmp.eq.s32.totalorder %s18, 1
    %p41 = por %p39, %p40
    %p43 = scmp.ne.s32.totalorder %s26, %s42
    %p44 = scmp.eq.s32.totalorder %s18, 0
    %p45 = por %p43, %p44
    %s46 = ssub.s32 %s12, %s19
    %p47 = scmp.eq.s32.totalorder %s46, 0
    %s49 = sadd.s32 %s48, 1
    %s50 = scalar_select %p47, %s48, %s49
    %p53 = pneg %p47
    %p54 = scmp.eq.s32.totalorder %s12, 1
    %p55 = por %p53, %p54
    %p56 = scmp.ne.s32.totalorder %s48, %s51
    %p57 = scmp.eq.s32.totalorder %s12, 0
    %p58 = por %p56, %p57
    %p59 = scmp.ne.s32.totalorder %s48, %s51
    %p60 = scmp.eq.s32.totalorder %s17, 1
    %p61 = por %p59, %p60
    %p62 = scmp.ne.s32.totalorder %s51, %s52
    %p63 = scmp.eq.s32.totalorder %s17, 0
    %p64 = por %p62, %p63
    %p65 = scmp.ne.s32.totalorder %s51, %s52
    %p66 = scmp.eq.s32.totalorder %s18, 1
    %p67 = por %p65, %p66
    %p69 = scmp.ne.s32.totalorder %s52, %s68
    %p70 = scmp.eq.s32.totalorder %s18, 0
    %p71 = por %p69, %p70
    %s73 = sadd.s32 %s72, 1
    %p76 = scmp.eq.s32.totalorder %s12, 1
    %p77 = scmp.ne.s32.totalorder %s72, %s74
    %p78 = scmp.eq.s32.totalorder %s12, 0
    %p79 = por %p77, %p78
    %p80 = scmp.ne.s32.totalorder %s72, %s74
    %p81 = scmp.eq.s32.totalorder %s17, 1
    %p82 = por %p80, %p81
    %p83 = scmp.ne.s32.totalorder %s74, %s75
    %p84 = scmp.eq.s32.totalorder %s17, 0
    %p85 = por %p83, %p84
    %p86 = scmp.ne.s32.totalorder %s74, %s75
    %p87 = scmp.eq.s32.totalorder %s18, 1
    %p88 = por %p86, %p87
    %p90 = scmp.ne.s32.totalorder %s75, %s89
    %p91 = scmp.eq.s32.totalorder %s18, 0
    %p92 = por %p90, %p91
    %s94 = sadd.s32 %s93, 1
    %p97 = scmp.eq.s32.totalorder %s12, 1
    %p98 = scmp.ne.s32.totalorder %s93, %s95
    %p99 = scmp.eq.s32.totalorder %s12, 0
    %p100 = por %p98, %p99
    %p101 = scmp.ne.s32.totalorder %s93, %s95
    %p102 = scmp.eq.s32.totalorder %s17, 1
    %p103 = por %p101, %p102
    %p104 = scmp.ne.s32.totalorder %s95, %s96
    %p105 = scmp.eq.s32.totalorder %s17, 0
    %p106 = por %p104, %p105
    %p107 = scmp.ne.s32.totalorder %s95, %s96
    %p108 = scmp.eq.s32.totalorder %s18, 1
    %p109 = por %p107, %p108
    %p111 = scmp.ne.s32.totalorder %s96, %s110
    %p112 = scmp.eq.s32.totalorder %s18, 0
    %p113 = por %p111, %p112
    %s115 = sadd.s32 %s114, 1
    %p118 = scmp.eq.s32.totalorder %s12, 1
    %p119 = scmp.ne.s32.totalorder %s114, %s116
    %p120 = scmp.eq.s32.totalorder %s12, 0
    %p121 = por %p119, %p120
    %p122 = scmp.ne.s32.totalorder %s114, %s116
    %p123 = scmp.eq.s32.totalorder %s17, 1
    %p124 = por %p122, %p123
    %p125 = scmp.ne.s32.totalorder %s116, %s117
    %p126 = scmp.eq.s32.totalorder %s17, 0
    %p127 = por %p125, %p126
    %p128 = scmp.ne.s32.totalorder %s116, %s117
    %p129 = scmp.eq.s32.totalorder %s18, 1
    %p130 = por %p128, %p129
    %p132 = scmp.ne.s32.totalorder %s117, %s131
    %p133 = scmp.eq.s32.totalorder %s18, 0
    %p134 = por %p132, %p133
    %s136 = sadd.s32 %s135, 1
    %p139 = scmp.eq.s32.totalorder %s12, 1
    %p140 = scmp.ne.s32.totalorder %s135, %s137
    %p141 = scmp.eq.s32.totalorder %s12, 0
    %p142 = por %p140, %p141
    %p143 = scmp.ne.s32.totalorder %s135, %s137
    %p144 = scmp.eq.s32.totalorder %s17, 1
    %p145 = por %p143, %p144
    %p146 = scmp.ne.s32.totalorder %s137, %s138
    %p147 = scmp.eq.s32.totalorder %s17, 0
    %p148 = por %p146, %p147
    %p149 = scmp.ne.s32.totalorder %s137, %s138
    %p150 = scmp.eq.s32.totalorder %s18, 1
    %p151 = por %p149, %p150
    %p153 = scmp.ne.s32.totalorder %s138, %s152
    %p154 = scmp.eq.s32.totalorder %s18, 0
    %p155 = por %p153, %p154
    %s156 = ssub.s32 %s12, %s19
    %p157 = scmp.eq.s32.totalorder %s156, 0
    %s159 = sadd.s32 %s158, 1
    %s160 = scalar_select %p157, %s158, %s159
    %p163 = pneg %p157
    %p164 = scmp.eq.s32.totalorder %s12, 1
    %p165 = por %p163, %p164
    %p166 = scmp.ne.s32.totalorder %s158, %s161
    %p167 = scmp.eq.s32.totalorder %s12, 0
    %p168 = por %p166, %p167
    %p169 = scmp.ne.s32.totalorder %s158, %s161
    %p170 = scmp.eq.s32.totalorder %s17, 1
    %p171 = por %p169, %p170
    %p172 = scmp.ne.s32.totalorder %s161, %s162
    %p173 = scmp.eq.s32.totalorder %s17, 0
    %p174 = por %p172, %p173
    %p175 = scmp.ne.s32.totalorder %s161, %s162
    %p176 = scmp.eq.s32.totalorder %s18, 1
    %p177 = por %p175, %p176
    %p179 = scmp.ne.s32.totalorder %s162, %s178
    %p180 = scmp.eq.s32.totalorder %s18, 0
    %p181 = por %p179, %p180
    %p182 = scmp.le.s32.totalorder 1, %s12
    %p183 = scmp.lt.s32.totalorder %s12, 3
    %p184 = pnand %p182, %p183
    %p185 = pneg %p184
    // Predicated region
    $region9: #{residual_block.5} parent=5 // pred_check
      _
    $region10: #{residual_block.5} parent=5 // pred_check_branch
      %187 = sbr.rel (%p184) target = $region12
    $region11: #{residual_block.5} parent=5 // pred_region
      %s188 = ssub.s32 %s12, 1
      // Predicated region
      $region13: #{residual_block.5} parent=11 // pred_check
        %p189 = pneg %p85
      $region14: #{residual_block.5} parent=11 // pred_check_branch
        %191 = sbr.rel (%p189) target = $region16
      $region15: #{residual_block.5} parent=11 // pred_region
        _
      $region16: #{residual_block.5} parent=11 // pred_fallthru
        _
      // Predicated region
      $region17: #{residual_block.5} parent=11 // pred_check
        %p192 = pneg %p106
      $region18: #{residual_block.5} parent=11 // pred_check_branch
        %194 = sbr.rel (%p192) target = $region20
      $region19: #{residual_block.5} parent=11 // pred_region
        _
      $region20: #{residual_block.5} parent=11 // pred_fallthru
        _
      // Predicated region
      $region21: #{residual_block.5} parent=11 // pred_check
        %p195 = pneg %p127
      $region22: #{residual_block.5} parent=11 // pred_check_branch
        %197 = sbr.rel (%p195) target = $region24
      $region23: #{residual_block.5} parent=11 // pred_region
        _
      $region24: #{residual_block.5} parent=11 // pred_fallthru
        _
      // Predicated region
      $region25: #{residual_block.5} parent=11 // pred_check
        %p198 = pneg %p148
      $region26: #{residual_block.5} parent=11 // pred_check_branch
        %200 = sbr.rel (%p198) target = $region28
      $region27: #{residual_block.5} parent=11 // pred_region
        _
      $region28: #{residual_block.5} parent=11 // pred_fallthru
        _
    $region12: #{residual_block.5} parent=5 // pred_fallthru
      _
    %p201 = scmp.lt.s32.totalorder %s12, 2
    // Predicated region
    $region29: #{residual_block.5} parent=5 // pred_check
      %p202 = pneg %p201
    $region30: #{residual_block.5} parent=5 // pred_check_branch
      %204 = sbr.rel (%p202) target = $region32
    $region31: #{residual_block.5} parent=5 // pred_region
      // Predicated region
      $region33: #{residual_block.5} parent=31 // pred_check
        %p205 = pneg %p32
      $region34: #{residual_block.5} parent=31 // pred_check_branch
        %207 = sbr.rel (%p205) target = $region36
      $region35: #{residual_block.5} parent=31 // pred_region
        %p208 = scmp.lt.s32.totalorder %s12, 1
        %s209 = scalar_select %p208, %s12, 1
        %s210 = smul.addr %s209, 2
        %s211 = smul.addr %s210, 8
        %s212 = scalar_lea.vmem %s0, %s211
      $region36: #{residual_block.5} parent=31 // pred_fallthru
        _
      // Predicated region
      $region37: #{residual_block.5} parent=31 // pred_check
        %p213 = pneg %p58
      $region38: #{residual_block.5} parent=31 // pred_check_branch
        %215 = sbr.rel (%p213) target = $region40
      $region39: #{residual_block.5} parent=31 // pred_region
        %p216 = scmp.lt.s32.totalorder %s12, 1
        %s217 = scalar_select %p216, %s12, 1
        %s218 = smul.addr %s217, 2
        %s219 = smul.addr %s218, 8
        %s220 = scalar_lea.vmem %s1, %s219
      $region40: #{residual_block.5} parent=31 // pred_fallthru
        _
    $region32: #{residual_block.5} parent=5 // pred_fallthru
      _
    %p221 = scmp.le.s32.totalorder 1, %s12
    %p222 = scmp.lt.s32.totalorder %s12, 3
    %p223 = pnand %p221, %p222
    %p224 = pneg %p223
    // Predicated region
    $region41: #{residual_block.5} parent=5 // pred_check
      _
    $region42: #{residual_block.5} parent=5 // pred_check_branch
      %226 = sbr.rel (%p223) target = $region44
    $region43: #{residual_block.5} parent=5 // pred_region
      %s227 = ssub.s32 %s12, 1
      %p228 = scmp.lt.s32.totalorder %s17, 1
      %s229 = scalar_select %p228, %s17, 1
      %s230 = smul.addr %s229, 2
      %s231 = smul.addr %s230, 8
      %s232 = scalar_lea.vmem %s0, %s231
      %p233 = pneg %p38
      %p234 = pneg %p35
      %p235 = scmp.lt.s32.totalorder %s17, 1
      %s236 = scalar_select %p235, %s17, 1
      %s237 = smul.addr %s236, 2
      %s238 = smul.addr %s237, 8
      %s239 = scalar_lea.vmem %s1, %s238
      %p240 = pneg %p64
      %p241 = pneg %p61
      %p242 = pneg %p85
      %p243 = pneg %p82
      %p244 = pneg %p106
      %p245 = pneg %p103
      %p246 = pneg %p127
      %p247 = pneg %p124
      %p248 = pneg %p148
      %p249 = pneg %p145
      %p250 = pneg %p174
      %p251 = pneg %p171
      %p252 = scmp.lt.s32.totalorder %s17, 1
      %s253 = scalar_select %p252, %s17, 1
      %s254 = smul.addr %s253, 2
      %s255 = smul.addr %s254, 8
      %s256 = scalar_lea.vmem %s6, %s255
      %p257 = scmp.lt.s32.totalorder %s17, 1
      %s258 = scalar_select %p257, %s17, 1
      %s259 = smul.addr %s258, 2
      %s260 = smul.addr %s259, 8
      %s261 = scalar_lea.vmem %s0, %s260
      %p262 = scmp.lt.s32.totalorder %s17, 1
      %s263 = scalar_select %p262, %s17, 1
      %s264 = smul.addr %s263, 2
      %s265 = smul.addr %s264, 8
      %s266 = scalar_lea.vmem %s1, %s265
      %p267 = scmp.lt.s32.totalorder %s17, 1
      %s268 = scalar_select %p267, %s17, 1
      %s269 = smul.addr %s268, 2
      %s270 = smul.addr %s269, 8
      %s271 = scalar_lea.vmem %s6, %s270
      %v273 = vld [vmem:[%s261] sm:$0xff]
      %v274 = vld [vmem:[%s261 + $0x8] sm:$0xff]
      %v275 = vld [vmem:[%s4] sm:$0x1]
      %v277 = vlaneseq
      %v278 = vshrl.u32 %v277, 7
      %v279 = vsub.s32 0, %v278
      %v280 = vrot.slane %v275, %v279
      %v282 = vmul.f32 %v273, %v280
      %v283 = vmul.f32 %v274, %v280
      %v284 = vld [vmem:[%s5] sm:$0x1]
      %v286 = vlaneseq
      %v287 = vshrl.u32 %v286, 7
      %v288 = vsub.s32 0, %v287
      %v289 = vrot.slane %v284, %v288
      %v291 = vadd.f32 %v282, %v289
      %v292 = vadd.f32 %v283, %v289
      %v293 = vld [vmem:[%s266] sm:$0xff]
      %v294 = vld [vmem:[%s266 + $0x8] sm:$0xff]
      %v295 = vpack.c.bf16 %v294, %v293
      %v296 = vld [vmem:[%s2] sm:$0xf]
      %v297 = vld [vmem:[%s2 + $0x4] sm:$0xf]
      %v298 = vld [vmem:[%s2 + $0x8] sm:$0xf]
      %v299 = vld [vmem:[%s2 + $0xc] sm:$0xf]
      %v300 = vld [vmem:[%s2 + $0x10] sm:$0xf]
      %v301 = vld [vmem:[%s2 + $0x14] sm:$0xf]
      %v302 = vld [vmem:[%s2 + $0x18] sm:$0xf]
      %v303 = vld [vmem:[%s2 + $0x1c] sm:$0xf]
      %v304 = vld [vmem:[%s3] sm:$0x1]
      %v306 = vlaneseq
      %v307 = vshrl.u32 %v306, 7
      %v308 = vsub.s32 0, %v307
      %v309 = vrot.slane %v304, %v308
      %v319 = vunpack.c.l.b16 %v296
      %v320 = vunpack.c.l.b16 %v297
      %v321 = vunpack.c.l.b16 %v298
      %v322 = vunpack.c.l.b16 %v299
      %v323 = vunpack.c.l.b16 %v300
      %v324 = vunpack.c.l.b16 %v301
      %v325 = vunpack.c.l.b16 %v302
      %v326 = vunpack.c.l.b16 %v303
      %v327 = vpack.c.b16 %v320, %v319
      %v328 = vpack.c.b16 %v322, %v321
      %v329 = vpack.c.b16 %v324, %v323
      %v330 = vpack.c.b16 %v326, %v325
      %vm335 = vcmask 523264
      %v337 = vsel %vm335, %v295, 0
      %339 = vmatprep.subr.bf16.mxu0 0
      %340 = vmatpush1.bf16.msra.mxu0 %v327
      %341 = vmatprep.subr.bf16.mxu0 0
      %342 = vmatpush1.bf16.msra.mxu0 %v328
      %343 = vmatprep.subr.bf16.mxu0 0
      %344 = vmatpush1.bf16.msra.mxu0 %v329
      %345 = vmatprep.subr.bf16.mxu0 0
      %346 = vmatpush1.bf16.msra.mxu0 %v330
      %347 = vmatprep.subr.bf16.mxu0 0
      %348 = vmatpush1.bf16.msra.mxu0 0
      %349 = vmatprep.subr.bf16.mxu0 0
      %350 = vmatpush1.bf16.msra.mxu0 0
      %351 = vmatprep.subr.bf16.mxu0 0
      %352 = vmatpush1.bf16.msra.mxu0 0
      %353 = vmatprep.subr.bf16.mxu0 0
      %354 = vmatpush1.bf16.msra.mxu0 0
      %355 = vmatprep.subr.bf16.mxu0 0
      %356 = vmatpush1.bf16.msra.mxu0 0
      %357 = vmatprep.subr.bf16.mxu0 0
      %358 = vmatpush1.bf16.msra.mxu0 0
      %359 = vmatprep.subr.bf16.mxu0 0
      %360 = vmatpush1.bf16.msra.mxu0 0
      %361 = vmatprep.subr.bf16.mxu0 0
      %362 = vmatpush1.bf16.msra.mxu0 0
      %363 = vmatprep.subr.bf16.mxu0 0
      %364 = vmatpush1.bf16.msra.mxu0 0
      %365 = vmatprep.subr.bf16.mxu0 0
      %366 = vmatpush1.bf16.msra.mxu0 0
      %367 = vmatprep.subr.bf16.mxu0 0
      %368 = vmatpush1.bf16.msra.mxu0 0
      %369 = vmatprep.subr.bf16.mxu0 0
      %370 = vmatpush1.bf16.msra.mxu0 0
      %371 = vmatprep.mubr.bf16.mxu0 0
      %372 = vmatmul.mubr.bf16.gmra.mrb[0].mxu0 %v337
      %v373 = vpop.f32.mrb[0].mxu0
      %v374 = vadd.f32 %v309, %v373
      %v375 = vpop.f32.mrb[0].mxu0
      %v376 = vpop.f32.mrb[0].mxu0
      %v377 = vadd.f32 %v309, %v376
      %v378 = vpop.f32.mrb[0].mxu0
      %379 = vdwg.mxu0
      %v380 = vadd.f32 %v291, %v374
      %v381 = vadd.f32 %v292, %v377
      %382 = vst [vmem:[%s271] sm:$0xff] %v380
      %383 = vst [vmem:[%s271 + $0x8] sm:$0xff] %v381
      %p384 = scmp.lt.s32.totalorder %s17, 1
      %s385 = scalar_select %p384, %s17, 1
      %s386 = smul.addr %s385, 2
      %s387 = smul.addr %s386, 8
      %s388 = scalar_lea.vmem %s6, %s387
      // Predicated region
      $region45: #{residual_block.5} parent=43 // pred_check
        %p389 = pneg %p171
      $region46: #{residual_block.5} parent=43 // pred_check_branch
        %391 = sbr.rel (%p389) target = $region48
      $region47: #{residual_block.5} parent=43 // pred_region
        _
      $region48: #{residual_block.5} parent=43 // pred_fallthru
        _
    $region44: #{residual_block.5} parent=5 // pred_fallthru
      _
    %p392 = scmp.le.s32.totalorder 2, %s12
    // Predicated region
    $region49: #{residual_block.5} parent=5 // pred_check
      %p393 = pneg %p392
    $region50: #{residual_block.5} parent=5 // pred_check_branch
      %395 = sbr.rel (%p393) target = $region52
    $region51: #{residual_block.5} parent=5 // pred_region
      %s396 = ssub.s32 %s12, 2
      // Predicated region
      $region53: #{residual_block.5} parent=51 // pred_check
        %p397 = pneg %p177
      $region54: #{residual_block.5} parent=51 // pred_check_branch
        %399 = sbr.rel (%p397) target = $region56
      $region55: #{residual_block.5} parent=51 // pred_region
        %p400 = scmp.lt.s32.totalorder %s18, 1
        %s401 = scalar_select %p400, %s18, 1
        %s402 = smul.addr %s401, 2
        %s403 = smul.addr %s402, 8
        %s404 = scalar_lea.vmem %s6, %s403
      $region56: #{residual_block.5} parent=51 // pred_fallthru
        _
    $region52: #{residual_block.5} parent=5 // pred_fallthru
      _
  $region6: #{residual_block.5} parent=0 // loop_footer
    %s16 = sadd.s32 1, %s12
  $region7: #{residual_block.5} parent=0 // loop_footer_branch
    %11 = sbr.rel target = $region3
  $region8: #{residual_block.5} parent=0 // loop_exit
    _

// kernel: residual_block.4
$region0: #{residual_block.4}
  #allocation0 [shape = 'u32[]', space=smem, size = 0x4, offset = 0x4, fixed_abs, tag = 'smem constant byte address 0x4 - core index']
  #allocation1 [shape = 'u32[144,128]{1,0:T(1,128)}', space=vmem, size = 0x12000, scoped, tag = 'internal scratch']
  %s0 = inlined_call_operand.vmem [shape: f32[2,18,128], index: 0, kind: input, shape index: {}]
  %s1 = inlined_call_operand.vmem [shape: bf16[3,128,128], index: 1, kind: input, shape index: {}]
  %s2 = inlined_call_operand.vmem [shape: f32[1,128], index: 2, kind: input, shape index: {}]
  %s3 = inlined_call_operand.vmem [shape: f32[1,128], index: 3, kind: input, shape index: {}]
  %s4 = inlined_call_operand.vmem [shape: f32[2,16,128], index: 4, kind: output, shape index: {0}]
  %s5 = inlined_call_operand.vmem [shape: f32[2,2,128], index: 5, kind: output, shape index: {1}]
  %6 = xla_tuple %s4, %s5
  %s7 = sld [smem:[#allocation0]]
  $region57: #{residual_block.4} parent=0
    _
  %s9 = ssub.s32 1, %s7
  %s10 = scalar_select 0, %s9, %s7
  loop: start=0, step=1, limit=4
  $region2: #{residual_block.4} parent=0 // loop_pre_header
    _
  $region3: #{residual_block.4} parent=0 // loop_header
    %s12 = sphi 0, %s16
    %p13 = scmp.ge.s32.totalorder %s12, 4
    %s22 = sphi 0, %s24
    %s25 = sphi 0, %s22
    %s26 = sphi 0, %s25
    %s42 = sphi 0, %s26
    %s46 = sphi 0, %s46
    %s48 = sphi 0, %s46
    %s49 = sphi 0, %s48
    %s63 = sphi 0, %s49
    %s67 = sphi 0, %s67
    %s69 = sphi 0, %s67
    %s70 = sphi 0, %s69
    %s84 = sphi 0, %s70
    %s88 = sphi 0, %s88
    %s90 = sphi 0, %s88
    %s91 = sphi 0, %s90
    %s105 = sphi 0, %s91
    %s111 = sphi 0, %s113
    %s114 = sphi 0, %s111
    %s115 = sphi 0, %s114
    %s131 = sphi 0, %s115
    %s137 = sphi 0, %s139
    %s140 = sphi 0, %s137
    %s141 = sphi 0, %s140
    %s157 = sphi 0, %s141
  $region4: #{residual_block.4} parent=0 // loop_header_branch
    %15 = sbr.rel (%p13) target = $region8
  $region5: #{residual_block.4} parent=0 // loop_body
    %s17 = ssub.s32 %s12, 1
    %s18 = ssub.s32 %s12, 2
    %s19 = sadd.s32 %s12, 1
    %s20 = ssub.s32 %s12, %s19
    %p21 = scmp.eq.s32.totalorder %s20, 0
    %s23 = sadd.s32 %s22, 1
    %s24 = scalar_select %p21, %s22, %s23
    %p27 = pneg %p21
    %p28 = scmp.eq.s32.totalorder %s12, 1
    %p29 = por %p27, %p28
    %p30 = scmp.ne.s32.totalorder %s22, %s25
    %p31 = scmp.eq.s32.totalorder %s12, 0
    %p32 = por %p30, %p31
    %p33 = scmp.ne.s32.totalorder %s22, %s25
    %p34 = scmp.eq.s32.totalorder %s17, 1
    %p35 = por %p33, %p34
    %p36 = scmp.ne.s32.totalorder %s25, %s26
    %p37 = scmp.eq.s32.totalorder %s17, 0
    %p38 = por %p36, %p37
    %p39 = scmp.ne.s32.totalorder %s25, %s26
    %p40 = scmp.eq.s32.totalorder %s18, 1
    %p41 = por %p39, %p40
    %p43 = scmp.ne.s32.totalorder %s26, %s42
    %p44 = scmp.eq.s32.totalorder %s18, 0
    %p45 = por %p43, %p44
    %s47 = sadd.s32 %s46, 1
    %p50 = scmp.eq.s32.totalorder %s12, 1
    %p51 = scmp.ne.s32.totalorder %s46, %s48
    %p52 = scmp.eq.s32.totalorder %s12, 0
    %p53 = por %p51, %p52
    %p54 = scmp.ne.s32.totalorder %s46, %s48
    %p55 = scmp.eq.s32.totalorder %s17, 1
    %p56 = por %p54, %p55
    %p57 = scmp.ne.s32.totalorder %s48, %s49
    %p58 = scmp.eq.s32.totalorder %s17, 0
    %p59 = por %p57, %p58
    %p60 = scmp.ne.s32.totalorder %s48, %s49
    %p61 = scmp.eq.s32.totalorder %s18, 1
    %p62 = por %p60, %p61
    %p64 = scmp.ne.s32.totalorder %s49, %s63
    %p65 = scmp.eq.s32.totalorder %s18, 0
    %p66 = por %p64, %p65
    %s68 = sadd.s32 %s67, 1
    %p71 = scmp.eq.s32.totalorder %s12, 1
    %p72 = scmp.ne.s32.totalorder %s67, %s69
    %p73 = scmp.eq.s32.totalorder %s12, 0
    %p74 = por %p72, %p73
    %p75 = scmp.ne.s32.totalorder %s67, %s69
    %p76 = scmp.eq.s32.totalorder %s17, 1
    %p77 = por %p75, %p76
    %p78 = scmp.ne.s32.totalorder %s69, %s70
    %p79 = scmp.eq.s32.totalorder %s17, 0
    %p80 = por %p78, %p79
    %p81 = scmp.ne.s32.totalorder %s69, %s70
    %p82 = scmp.eq.s32.totalorder %s18, 1
    %p83 = por %p81, %p82
    %p85 = scmp.ne.s32.totalorder %s70, %s84
    %p86 = scmp.eq.s32.totalorder %s18, 0
    %p87 = por %p85, %p86
    %s89 = sadd.s32 %s88, 1
    %p92 = scmp.eq.s32.totalorder %s12, 1
    %p93 = scmp.ne.s32.totalorder %s88, %s90
    %p94 = scmp.eq.s32.totalorder %s12, 0
    %p95 = por %p93, %p94
    %p96 = scmp.ne.s32.totalorder %s88, %s90
    %p97 = scmp.eq.s32.totalorder %s17, 1
    %p98 = por %p96, %p97
    %p99 = scmp.ne.s32.totalorder %s90, %s91
    %p100 = scmp.eq.s32.totalorder %s17, 0
    %p101 = por %p99, %p100
    %p102 = scmp.ne.s32.totalorder %s90, %s91
    %p103 = scmp.eq.s32.totalorder %s18, 1
    %p104 = por %p102, %p103
    %p106 = scmp.ne.s32.totalorder %s91, %s105
    %p107 = scmp.eq.s32.totalorder %s18, 0
    %p108 = por %p106, %p107
    %s109 = ssub.s32 %s12, %s19
    %p110 = scmp.eq.s32.totalorder %s109, 0
    %s112 = sadd.s32 %s111, 1
    %s113 = scalar_select %p110, %s111, %s112
    %p116 = pneg %p110
    %p117 = scmp.eq.s32.totalorder %s12, 1
    %p118 = por %p116, %p117
    %p119 = scmp.ne.s32.totalorder %s111, %s114
    %p120 = scmp.eq.s32.totalorder %s12, 0
    %p121 = por %p119, %p120
    %p122 = scmp.ne.s32.totalorder %s111, %s114
    %p123 = scmp.eq.s32.totalorder %s17, 1
    %p124 = por %p122, %p123
    %p125 = scmp.ne.s32.totalorder %s114, %s115
    %p126 = scmp.eq.s32.totalorder %s17, 0
    %p127 = por %p125, %p126
    %p128 = scmp.ne.s32.totalorder %s114, %s115
    %p129 = scmp.eq.s32.totalorder %s18, 1
    %p130 = por %p128, %p129
    %p132 = scmp.ne.s32.totalorder %s115, %s131
    %p133 = scmp.eq.s32.totalorder %s18, 0
    %p134 = por %p132, %p133
    %s135 = ssub.s32 %s12, %s19
    %p136 = scmp.eq.s32.totalorder %s135, 0
    %s138 = sadd.s32 %s137, 1
    %s139 = scalar_select %p136, %s137, %s138
    %p142 = pneg %p136
    %p143 = scmp.eq.s32.totalorder %s12, 1
    %p144 = por %p142, %p143
    %p145 = scmp.ne.s32.totalorder %s137, %s140
    %p146 = scmp.eq.s32.totalorder %s12, 0
    %p147 = por %p145, %p146
    %p148 = scmp.ne.s32.totalorder %s137, %s140
    %p149 = scmp.eq.s32.totalorder %s17, 1
    %p150 = por %p148, %p149
    %p151 = scmp.ne.s32.totalorder %s140, %s141
    %p152 = scmp.eq.s32.totalorder %s17, 0
    %p153 = por %p151, %p152
    %p154 = scmp.ne.s32.totalorder %s140, %s141
    %p155 = scmp.eq.s32.totalorder %s18, 1
    %p156 = por %p154, %p155
    %p158 = scmp.ne.s32.totalorder %s141, %s157
    %p159 = scmp.eq.s32.totalorder %s18, 0
    %p160 = por %p158, %p159
    %p161 = scmp.le.s32.totalorder 1, %s12
    %p162 = scmp.lt.s32.totalorder %s12, 3
    %p163 = pnand %p161, %p162
    %p164 = pneg %p163
    // Predicated region
    $region9: #{residual_block.4} parent=5 // pred_check
      _
    $region10: #{residual_block.4} parent=5 // pred_check_branch
      %166 = sbr.rel (%p163) target = $region12
    $region11: #{residual_block.4} parent=5 // pred_region
      %s167 = ssub.s32 %s12, 1
      // Predicated region
      $region13: #{residual_block.4} parent=11 // pred_check
        %p168 = pneg %p59
      $region14: #{residual_block.4} parent=11 // pred_check_branch
        %170 = sbr.rel (%p168) target = $region16
      $region15: #{residual_block.4} parent=11 // pred_region
        _
      $region16: #{residual_block.4} parent=11 // pred_fallthru
        _
      // Predicated region
      $region17: #{residual_block.4} parent=11 // pred_check
        %p171 = pneg %p80
      $region18: #{residual_block.4} parent=11 // pred_check_branch
        %173 = sbr.rel (%p171) target = $region20
      $region19: #{residual_block.4} parent=11 // pred_region
        _
      $region20: #{residual_block.4} parent=11 // pred_fallthru
        _
      // Predicated region
      $region21: #{residual_block.4} parent=11 // pred_check
        %p174 = pneg %p101
      $region22: #{residual_block.4} parent=11 // pred_check_branch
        %176 = sbr.rel (%p174) target = $region24
      $region23: #{residual_block.4} parent=11 // pred_region
        _
      $region24: #{residual_block.4} parent=11 // pred_fallthru
        _
    $region12: #{residual_block.4} parent=5 // pred_fallthru
      _
    %p177 = scmp.lt.s32.totalorder %s12, 2
    // Predicated region
    $region25: #{residual_block.4} parent=5 // pred_check
      %p178 = pneg %p177
    $region26: #{residual_block.4} parent=5 // pred_check_branch
      %180 = sbr.rel (%p178) target = $region28
    $region27: #{residual_block.4} parent=5 // pred_region
      // Predicated region
      $region29: #{residual_block.4} parent=27 // pred_check
        %p181 = pneg %p32
      $region30: #{residual_block.4} parent=27 // pred_check_branch
        %183 = sbr.rel (%p181) target = $region32
      $region31: #{residual_block.4} parent=27 // pred_region
        %p184 = scmp.lt.s32.totalorder %s12, 1
        %s185 = scalar_select %p184, %s12, 1
        %s186 = smul.addr %s185, 3
        %s187 = smul.addr %s186, 8
        %s188 = scalar_lea.vmem %s0, %s187
      $region32: #{residual_block.4} parent=27 // pred_fallthru
        _
    $region28: #{residual_block.4} parent=5 // pred_fallthru
      _
    %p189 = scmp.le.s32.totalorder 1, %s12
    %p190 = scmp.lt.s32.totalorder %s12, 3
    %p191 = pnand %p189, %p190
    %p192 = pneg %p191
    // Predicated region
    $region33: #{residual_block.4} parent=5 // pred_check
      _
    $region34: #{residual_block.4} parent=5 // pred_check_branch
      %194 = sbr.rel (%p191) target = $region36
    $region35: #{residual_block.4} parent=5 // pred_region
      %s195 = ssub.s32 %s12, 1
      %p196 = scmp.lt.s32.totalorder %s17, 1
      %s197 = scalar_select %p196, %s17, 1
      %s198 = smul.addr %s197, 3
      %s199 = smul.addr %s198, 8
      %s200 = scalar_lea.vmem %s0, %s199
      %p201 = pneg %p38
      %p202 = pneg %p35
      %p203 = pneg %p59
      %p204 = pneg %p56
      %p205 = pneg %p80
      %p206 = pneg %p77
      %p207 = pneg %p101
      %p208 = pneg %p98
      %p209 = pneg %p127
      %p210 = pneg %p124
      %p211 = scmp.lt.s32.totalorder %s17, 1
      %s212 = scalar_select %p211, %s17, 1
      %s213 = smul.addr %s212, 2
      %s214 = smul.addr %s213, 8
      %s215 = scalar_lea.vmem %s4, %s214
      %p216 = pneg %p153
      %p217 = pneg %p150
      %p218 = scmp.lt.s32.totalorder %s17, 1
      %s219 = scalar_select %p218, %s17, 1
      %s220 = smul.addr %s219, 2
      %s221 = scalar_lea.vmem %s5, %s220
      %p222 = scmp.lt.s32.totalorder %s17, 1
      %s223 = scalar_select %p222, %s17, 1
      %s224 = smul.addr %s223, 3
      %s225 = smul.addr %s224, 8
      %s226 = scalar_lea.vmem %s0, %s225
      %p227 = scmp.lt.s32.totalorder %s17, 1
      %s228 = scalar_select %p227, %s17, 1
      %s229 = smul.addr %s228, 2
      %s230 = smul.addr %s229, 8
      %s231 = scalar_lea.vmem %s4, %s230
      %p232 = scmp.lt.s32.totalorder %s17, 1
      %s233 = scalar_select %p232, %s17, 1
      %s234 = smul.addr %s233, 2
      %s235 = scalar_lea.vmem %s5, %s234
      %v237 = vld [vmem:[%s226] sm:$0xff]
      %v238 = vld [vmem:[%s226 + $0x8] sm:$0xff]
      %v239 = vld [vmem:[%s226 + $0x10] sm:$0x3]
      %v240 = vld [vmem:[%s2] sm:$0x1]
      %v242 = vlaneseq
      %v243 = vshrl.u32 %v242, 7
      %v244 = vsub.s32 0, %v243
      %v245 = vrot.slane %v240, %v244
      %v247 = vmul.f32 %v237, %v245
      %v248 = vmul.f32 %v238, %v245
      %v249 = vmul.f32 %v239, %v245
      %v250 = vld [vmem:[%s3] sm:$0x1]
      %v252 = vlaneseq
      %v253 = vshrl.u32 %v252, 7
      %v254 = vsub.s32 0, %v253
      %v255 = vrot.slane %v250, %v254
      %v257 = vadd.f32 %v247, %v255
      %v258 = vadd.f32 %v248, %v255
      %v259 = vadd.f32 %v249, %v255
      %v260 = vmax.f32 %v257, 0.0
      %v261 = vmax.f32 %v258, 0.0
      %v262 = vmax.f32 %v259, 0.0
      %v263 = vlaneseq
      %v264 = vshrl.u32 %v263, 7
      %v265 = vadd.s32 %v264, 8
      %v266 = vadd.s32 %v264, 16
      %vm267 = vcmp.ge.s32.totalorder %v264, 1
      %vm268 = vcmp.ge.s32.totalorder %v265, 1
      %vm269 = vcmp.ge.s32.totalorder %v266, 1
      %vm270 = vcmp.le.s32.totalorder %v264, 16
      %vm271 = vcmp.le.s32.totalorder %v265, 16
      %vm272 = vcmp.le.s32.totalorder %v266, 16
      %vm273 = vmand %vm267, %vm270
      %vm274 = vmand %vm268, %vm271
      %vm275 = vmand %vm269, %vm272
      %v276 = vsel %vm273, 1, 0
      %v277 = vsel %vm274, 1, 0
      %v278 = vsel %vm275, 1, 0
      %vm279 = vcmp.eq.s32.totalorder %v276, 1
      %vm280 = vcmp.eq.s32.totalorder %v277, 1
      %vm281 = vcmp.eq.s32.totalorder %v278, 1
      %v282 = vsel %vm279, %v260, 0.0
      %v283 = vsel %vm280, %v261, 0.0
      %v284 = vsel %vm281, %v262, 0.0
      %v285 = vpack.c.bf16 %v283, %v282
      %v286 = vpack.c.bf16 %v284, %v284
      %v287 = vld [vmem:[%s1] sm:$0xf]
      %v288 = vld [vmem:[%s1 + $0x4] sm:$0xf]
      %v289 = vld [vmem:[%s1 + $0x8] sm:$0xf]
      %v290 = vld [vmem:[%s1 + $0xc] sm:$0xf]
      %v291 = vld [vmem:[%s1 + $0x10] sm:$0xf]
      %v292 = vld [vmem:[%s1 + $0x14] sm:$0xf]
      %v293 = vld [vmem:[%s1 + $0x18] sm:$0xf]
      %v294 = vld [vmem:[%s1 + $0x1c] sm:$0xf]
      %v295 = vld [vmem:[%s1 + $0x20] sm:$0xf]
      %v296 = vld [vmem:[%s1 + $0x24] sm:$0xf]
      %v297 = vld [vmem:[%s1 + $0x28] sm:$0xf]
      %v298 = vld [vmem:[%s1 + $0x2c] sm:$0xf]
      %v299 = vld [vmem:[%s1 + $0x30] sm:$0xf]
      %v300 = vld [vmem:[%s1 + $0x34] sm:$0xf]
      %v301 = vld [vmem:[%s1 + $0x38] sm:$0xf]
      %v302 = vld [vmem:[%s1 + $0x3c] sm:$0xf]
      %s303 = scalar_lea.vmem %s1, 64
      %v304 = vld [vmem:[%s303] sm:$0xf]
      %v305 = vld [vmem:[%s303 + $0x4] sm:$0xf]
      %v306 = vld [vmem:[%s303 + $0x8] sm:$0xf]
      %v307 = vld [vmem:[%s303 + $0xc] sm:$0xf]
      %v308 = vld [vmem:[%s303 + $0x10] sm:$0xf]
      %v309 = vld [vmem:[%s303 + $0x14] sm:$0xf]
      %v310 = vld [vmem:[%s303 + $0x18] sm:$0xf]
      %v311 = vld [vmem:[%s303 + $0x1c] sm:$0xf]
      %v312 = vld [vmem:[%s303 + $0x20] sm:$0xf]
      %v313 = vld [vmem:[%s303 + $0x24] sm:$0xf]
      %v314 = vld [vmem:[%s303 + $0x28] sm:$0xf]
      %v315 = vld [vmem:[%s303 + $0x2c] sm:$0xf]
      %v316 = vld [vmem:[%s303 + $0x30] sm:$0xf]
      %v317 = vld [vmem:[%s303 + $0x34] sm:$0xf]
      %v318 = vld [vmem:[%s303 + $0x38] sm:$0xf]
      %v319 = vld [vmem:[%s303 + $0x3c] sm:$0xf]
      %vm320 = vsmask.f32 7424
      %v322 = vshrl.u32 %v285, 16
      %v324 = vshll.u32 %v285, 16
      %v326 = vrot.slane %v324, 1
      %v327 = vor.u32 %v322, %v326
      %v329 = vshll.u32 %v286, 16
      %v331 = vrot.slane %v329, 1
      %v332 = vsel %vm320, %v327, %v331
      %v350 = vunpack.c.l.b16 %v304
      %v351 = vunpack.c.l.b16 %v305
      %v352 = vunpack.c.l.b16 %v306
      %v353 = vunpack.c.l.b16 %v307
      %v354 = vunpack.c.l.b16 %v308
      %v355 = vunpack.c.l.b16 %v309
      %v356 = vunpack.c.l.b16 %v310
      %v357 = vunpack.c.l.b16 %v311
      %v358 = vunpack.c.l.b16 %v312
      %v359 = vunpack.c.l.b16 %v313
      %v360 = vunpack.c.l.b16 %v314
      %v361 = vunpack.c.l.b16 %v315
      %v362 = vunpack.c.l.b16 %v316
      %v363 = vunpack.c.l.b16 %v317
      %v364 = vunpack.c.l.b16 %v318
      %v365 = vunpack.c.l.b16 %v319
      %v366 = vpack.c.b16 %v351, %v350
      %v367 = vpack.c.b16 %v353, %v352
      %v368 = vpack.c.b16 %v355, %v354
      %v369 = vpack.c.b16 %v357, %v356
      %v370 = vpack.c.b16 %v359, %v358
      %v371 = vpack.c.b16 %v361, %v360
      %v372 = vpack.c.b16 %v363, %v362
      %v373 = vpack.c.b16 %v365, %v364
      %382 = vmatprep.subr.bf16.mxu0 0
      %383 = vmatpush1.bf16.msra.mxu0 %v366
      %384 = vmatprep.subr.bf16.mxu0 0
      %385 = vmatpush1.bf16.msra.mxu0 %v367
      %386 = vmatprep.subr.bf16.mxu0 0
      %387 = vmatpush1.bf16.msra.mxu0 %v368
      %388 = vmatprep.subr.bf16.mxu0 0
      %389 = vmatpush1.bf16.msra.mxu0 %v369
      %390 = vmatprep.subr.bf16.mxu0 0
      %391 = vmatpush1.bf16.msra.mxu0 %v370
      %392 = vmatprep.subr.bf16.mxu0 0
      %393 = vmatpush1.bf16.msra.mxu0 %v371
      %394 = vmatprep.subr.bf16.mxu0 0
      %395 = vmatpush1.bf16.msra.mxu0 %v372
      %396 = vmatprep.subr.bf16.mxu0 0
      %397 = vmatpush1.bf16.msra.mxu0 %v373
      %398 = vmatprep.subr.bf16.mxu0 0
      %399 = vmatpush1.bf16.msra.mxu0 0
      %400 = vmatprep.subr.bf16.mxu0 0
      %401 = vmatpush1.bf16.msra.mxu0 0
      %402 = vmatprep.subr.bf16.mxu0 0
      %403 = vmatpush1.bf16.msra.mxu0 0
      %404 = vmatprep.subr.bf16.mxu0 0
      %405 = vmatpush1.bf16.msra.mxu0 0
      %406 = vmatprep.subr.bf16.mxu0 0
      %407 = vmatpush1.bf16.msra.mxu0 0
      %408 = vmatprep.subr.bf16.mxu0 0
      %409 = vmatpush1.bf16.msra.mxu0 0
      %410 = vmatprep.subr.bf16.mxu0 0
      %411 = vmatpush1.bf16.msra.mxu0 0
      %412 = vmatprep.subr.bf16.mxu0 0
      %413 = vmatpush1.bf16.msra.mxu0 0
      %414 = vmatprep.mubr.bf16.mxu0 0
      %415 = vmatmul.mubr.bf16.gmra.mrb[0].mxu0 %v332
      %v416 = vpop.f32.mrb[0].mxu0
      %v417 = vadd.f32 0.0, %v416
      %v418 = vpop.f32.mrb[0].mxu0
      %v419 = vpop.f32.mrb[0].mxu0
      %v420 = vadd.f32 0.0, %v419
      %v421 = vpop.f32.mrb[0].mxu0
      %422 = vdwg.mxu0
      %v439 = vunpack.c.l.b16 %v287
      %v440 = vunpack.c.l.b16 %v288
      %v441 = vunpack.c.l.b16 %v289
      %v442 = vunpack.c.l.b16 %v290
      %v443 = vunpack.c.l.b16 %v291
      %v444 = vunpack.c.l.b16 %v292
      %v445 = vunpack.c.l.b16 %v293
      %v446 = vunpack.c.l.b16 %v294
      %v447 = vunpack.c.l.b16 %v295
      %v448 = vunpack.c.l.b16 %v296
      %v449 = vunpack.c.l.b16 %v297
      %v450 = vunpack.c.l.b16 %v298
      %v451 = vunpack.c.l.b16 %v299
      %v452 = vunpack.c.l.b16 %v300
      %v453 = vunpack.c.l.b16 %v301
      %v454 = vunpack.c.l.b16 %v302
      %v455 = vpack.c.b16 %v440, %v439
      %v456 = vpack.c.b16 %v442, %v441
      %v457 = vpack.c.b16 %v444, %v443
      %v458 = vpack.c.b16 %v446, %v445
      %v459 = vpack.c.b16 %v448, %v447
      %v460 = vpack.c.b16 %v450, %v449
      %v461 = vpack.c.b16 %v452, %v451
      %v462 = vpack.c.b16 %v454, %v453
      %471 = vmatprep.subr.bf16.mxu0 0
      %472 = vmatpush1.bf16.msra.mxu0 %v455
      %473 = vmatprep.subr.bf16.mxu0 0
      %474 = vmatpush1.bf16.msra.mxu0 %v456
      %475 = vmatprep.subr.bf16.mxu0 0
      %476 = vmatpush1.bf16.msra.mxu0 %v457
      %477 = vmatprep.subr.bf16.mxu0 0
      %478 = vmatpush1.bf16.msra.mxu0 %v458
      %479 = vmatprep.subr.bf16.mxu0 0
      %480 = vmatpush1.bf16.msra.mxu0 %v459
      %481 = vmatprep.subr.bf16.mxu0 0
      %482 = vmatpush1.bf16.msra.mxu0 %v460
      %483 = vmatprep.subr.bf16.mxu0 0
      %484 = vmatpush1.bf16.msra.mxu0 %v461
      %485 = vmatprep.subr.bf16.mxu0 0
      %486 = vmatpush1.bf16.msra.mxu0 %v462
      %487 = vmatprep.subr.bf16.mxu0 0
      %488 = vmatpush1.bf16.msra.mxu0 0
      %489 = vmatprep.subr.bf16.mxu0 0
      %490 = vmatpush1.bf16.msra.mxu0 0
      %491 = vmatprep.subr.bf16.mxu0 0
      %492 = vmatpush1.bf16.msra.mxu0 0
      %493 = vmatprep.subr.bf16.mxu0 0
      %494 = vmatpush1.bf16.msra.mxu0 0
      %495 = vmatprep.subr.bf16.mxu0 0
      %496 = vmatpush1.bf16.msra.mxu0 0
      %497 = vmatprep.subr.bf16.mxu0 0
      %498 = vmatpush1.bf16.msra.mxu0 0
      %499 = vmatprep.subr.bf16.mxu0 0
      %500 = vmatpush1.bf16.msra.mxu0 0
      %501 = vmatprep.subr.bf16.mxu0 0
      %502 = vmatpush1.bf16.msra.mxu0 0
      %503 = vmatprep.mubr.bf16.mxu0 0
      %504 = vmatmul.mubr.bf16.gmra.mrb[0].mxu0 %v285
      %v505 = vpop.f32.mrb[0].mxu0
      %v506 = vadd.f32 %v417, %v505
      %v507 = vpop.f32.mrb[0].mxu0
      %v508 = vpop.f32.mrb[0].mxu0
      %v509 = vadd.f32 %v420, %v508
      %v510 = vpop.f32.mrb[0].mxu0
      %511 = vdwg.mxu0
      %s512 = scalar_lea.vmem %s1, 128
      %v513 = vld [vmem:[%s512] sm:$0xf]
      %v514 = vld [vmem:[%s512 + $0x4] sm:$0xf]
      %v515 = vld [vmem:[%s512 + $0x8] sm:$0xf]
      %v516 = vld [vmem:[%s512 + $0xc] sm:$0xf]
      %v517 = vld [vmem:[%s512 + $0x10] sm:$0xf]
      %v518 = vld [vmem:[%s512 + $0x14] sm:$0xf]
      %v519 = vld [vmem:[%s512 + $0x18] sm:$0xf]
      %v520 = vld [vmem:[%s512 + $0x1c] sm:$0xf]
      %v521 = vld [vmem:[%s512 + $0x20] sm:$0xf]
      %v522 = vld [vmem:[%s512 + $0x24] sm:$0xf]
      %v523 = vld [vmem:[%s512 + $0x28] sm:$0xf]
      %v524 = vld [vmem:[%s512 + $0x2c] sm:$0xf]
      %v525 = vld [vmem:[%s512 + $0x30] sm:$0xf]
      %v526 = vld [vmem:[%s512 + $0x34] sm:$0xf]
      %v527 = vld [vmem:[%s512 + $0x38] sm:$0xf]
      %v528 = vld [vmem:[%s512 + $0x3c] sm:$0xf]
      %vm531 = vcmask 1046528
      %v532 = vrot.slane %v285, 1
      %v533 = vrot.slane %v286, 1
      %v534 = vsel %vm531, %v532, %v533
      %v552 = vunpack.c.l.b16 %v513
      %v553 = vunpack.c.l.b16 %v514
      %v554 = vunpack.c.l.b16 %v515
      %v555 = vunpack.c.l.b16 %v516
      %v556 = vunpack.c.l.b16 %v517
      %v557 = vunpack.c.l.b16 %v518
      %v558 = vunpack.c.l.b16 %v519
      %v559 = vunpack.c.l.b16 %v520
      %v560 = vunpack.c.l.b16 %v521
      %v561 = vunpack.c.l.b16 %v522
      %v562 = vunpack.c.l.b16 %v523
      %v563 = vunpack.c.l.b16 %v524
      %v564 = vunpack.c.l.b16 %v525
      %v565 = vunpack.c.l.b16 %v526
      %v566 = vunpack.c.l.b16 %v527
      %v567 = vunpack.c.l.b16 %v528
      %v568 = vpack.c.b16 %v553, %v552
      %v569 = vpack.c.b16 %v555, %v554
      %v570 = vpack.c.b16 %v557, %v556
      %v571 = vpack.c.b16 %v559, %v558
      %v572 = vpack.c.b16 %v561, %v560
      %v573 = vpack.c.b16 %v563, %v562
      %v574 = vpack.c.b16 %v565, %v564
      %v575 = vpack.c.b16 %v567, %v566
      %584 = vmatprep.subr.bf16.mxu0 0
      %585 = vmatpush1.bf16.msra.mxu0 %v568
      %586 = vmatprep.subr.bf16.mxu0 0
      %587 = vmatpush1.bf16.msra.mxu0 %v569
      %588 = vmatprep.subr.bf16.mxu0 0
      %589 = vmatpush1.bf16.msra.mxu0 %v570
      %590 = vmatprep.subr.bf16.mxu0 0
      %591 = vmatpush1.bf16.msra.mxu0 %v571
      %592 = vmatprep.subr.bf16.mxu0 0
      %593 = vmatpush1.bf16.msra.mxu0 %v572
      %594 = vmatprep.subr.bf16.mxu0 0
      %595 = vmatpush1.bf16.msra.mxu0 %v573
      %596 = vmatprep.subr.bf16.mxu0 0
      %597 = vmatpush1.bf16.msra.mxu0 %v574
      %598 = vmatprep.subr.bf16.mxu0 0
      %599 = vmatpush1.bf16.msra.mxu0 %v575
      %600 = vmatprep.subr.bf16.mxu0 0
      %601 = vmatpush1.bf16.msra.mxu0 0
      %602 = vmatprep.subr.bf16.mxu0 0
      %603 = vmatpush1.bf16.msra.mxu0 0
      %604 = vmatprep.subr.bf16.mxu0 0
      %605 = vmatpush1.bf16.msra.mxu0 0
      %606 = vmatprep.subr.bf16.mxu0 0
      %607 = vmatpush1.bf16.msra.mxu0 0
      %608 = vmatprep.subr.bf16.mxu0 0
      %609 = vmatpush1.bf16.msra.mxu0 0
      %610 = vmatprep.subr.bf16.mxu0 0
      %611 = vmatpush1.bf16.msra.mxu0 0
      %612 = vmatprep.subr.bf16.mxu0 0
      %613 = vmatpush1.bf16.msra.mxu0 0
      %614 = vmatprep.subr.bf16.mxu0 0
      %615 = vmatpush1.bf16.msra.mxu0 0
      %616 = vmatprep.mubr.bf16.mxu0 0
      %617 = vmatmul.mubr.bf16.gmra.mrb[0].mxu0 %v534
      %v618 = vpop.f32.mrb[0].mxu0
      %v619 = vadd.f32 0.0, %v618
      %v620 = vpop.f32.mrb[0].mxu0
      %v621 = vpop.f32.mrb[0].mxu0
      %v622 = vadd.f32 0.0, %v621
      %v623 = vpop.f32.mrb[0].mxu0
      %624 = vdwg.mxu0
      %v625 = vadd.f32 %v506, %v619
      %v626 = vadd.f32 %v509, %v622
      %627 = vst [vmem:[%s231] sm:$0xff] %v625
      %628 = vst [vmem:[%s231 + $0x8] sm:$0xff] %v626
      %v629 = vadd.f32 %v625, %v626
      %v630 = vrot.slane %v629, 4
      %v631 = vadd.f32 %v629, %v630
      %v632 = vrot.slane %v631, 2
      %v633 = vadd.f32 %v631, %v632
      %v634 = vrot.slane %v633, 1
      %v635 = vadd.f32 %v633, %v634
      %636 = vst [vmem:[%s235] sm:$0x1] %v635
      %v637 = vmul.f32 %v625, %v625
      %v638 = vmul.f32 %v626, %v626
      %v639 = vadd.f32 %v637, %v638
      %v640 = vrot.slane %v639, 4
      %v641 = vadd.f32 %v639, %v640
      %v642 = vrot.slane %v641, 2
      %v643 = vadd.f32 %v641, %v642
      %v644 = vrot.slane %v643, 1
      %v645 = vadd.f32 %v643, %v644
      %646 = vst [vmem:[%s235 + $0x1] sm:$0x1] %v645
      %p647 = scmp.lt.s32.totalorder %s17, 1
      %s648 = scalar_select %p647, %s17, 1
      %s649 = smul.addr %s648, 2
      %s650 = smul.addr %s649, 8
      %s651 = scalar_lea.vmem %s4, %s650
      %p652 = scmp.lt.s32.totalorder %s17, 1
      %s653 = scalar_select %p652, %s17, 1
      %s654 = smul.addr %s653, 2
      %s655 = scalar_lea.vmem %s5, %s654
      // Predicated region
      $region37: #{residual_block.4} parent=35 // pred_check
        %p656 = pneg %p124
      $region38: #{residual_block.4} parent=35 // pred_check_branch
        %658 = sbr.rel (%p656) target = $region40
      $region39: #{residual_block.4} parent=35 // pred_region
        _
      $region40: #{residual_block.4} parent=35 // pred_fallthru
        _
      // Predicated region
      $region41: #{residual_block.4} parent=35 // pred_check
        %p659 = pneg %p150
      $region42: #{residual_block.4} parent=35 // pred_check_branch
        %661 = sbr.rel (%p659) target = $region44
      $region43: #{residual_block.4} parent=35 // pred_region
        _
      $region44: #{residual_block.4} parent=35 // pred_fallthru
        _
    $region36: #{residual_block.4} parent=5 // pred_fallthru
      _
    %p662 = scmp.le.s32.totalorder 2, %s12
    // Predicated region
    $region45: #{residual_block.4} parent=5 // pred_check
      %p663 = pneg %p662
    $region46: #{residual_block.4} parent=5 // pred_check_branch
      %665 = sbr.rel (%p663) target = $region48
    $region47: #{residual_block.4} parent=5 // pred_region
      %s666 = ssub.s32 %s12, 2
      // Predicated region
      $region49: #{residual_block.4} parent=47 // pred_check
        %p667 = pneg %p130
      $region50: #{residual_block.4} parent=47 // pred_check_branch
        %669 = sbr.rel (%p667) target = $region52
      $region51: #{residual_block.4} parent=47 // pred_region
        %p670 = scmp.lt.s32.totalorder %s18, 1
        %s671 = scalar_select %p670, %s18, 1
        %s672 = smul.addr %s671, 2
        %s673 = smul.addr %s672, 8
        %s674 = scalar_lea.vmem %s4, %s673
      $region52: #{residual_block.4} parent=47 // pred_fallthru
        _
      // Predicated region
      $region53: #{residual_block.4} parent=47 // pred_check
        %p675 = pneg %p156
      $region54: #{residual_block.4} parent=47 // pred_check_branch
        %677 = sbr.rel (%p675) target = $region56
      $region55: #{residual_block.4} parent=47 // pred_region
        %p678 = scmp.lt.s32.totalorder %s18, 1
        %s679 = scalar_select %p678, %s18, 1
        %s680 = smul.addr %s679, 2
        %s681 = scalar_lea.vmem %s5, %s680
      $region56: #{residual_block.4} parent=47 // pred_fallthru
        _
    $region48: #{residual_block.4} parent=5 // pred_fallthru
      _
  $region6: #{residual_block.4} parent=0 // loop_footer
    %s16 = sadd.s32 1, %s12
  $region7: #{residual_block.4} parent=0 // loop_footer_branch
    %11 = sbr.rel target = $region3
  $region8: #{residual_block.4} parent=0 // loop_exit
    _

</llo_original>
